<compile_context>
chip_gen: v7x
topology: tpu7x:2x2x1
jax: 0.10.0
libtpu: 0.0.40
codegen_flags: <defaults>
</compile_context>

<pallas_src>
import functools
import math

import jax
import jax.numpy as jnp
from jax.experimental import pallas as pl
from jax.experimental.pallas import tpu as pltpu  # noqa: F401  (TPU backend)

# ----------------------------- config ---------------------------------------
HIDDEN = 32
NUM_HEADS = 4
HEAD_DIM = HIDDEN // NUM_HEADS          # 8
NUM_KV_HEADS = 2
NUM_KV_GROUPS = NUM_HEADS // NUM_KV_HEADS
K_COMP_PER_HEAD = 4
V_COMP_PER_HEAD = 4
K_COMP_DIM = K_COMP_PER_HEAD * NUM_KV_HEADS
V_COMP_DIM = V_COMP_PER_HEAD * NUM_KV_HEADS
ROPE_THETA = 10000.0
BATCH = 2
SEQ = 8
Q_WINDOW = 4   # only gates KV-cache bookkeeping; no cache in this path

Q_DIM = NUM_HEADS * HEAD_DIM            # 32
KV_DIM = NUM_KV_HEADS * HEAD_DIM        # 16
FUSED_DIM = 2 * Q_DIM + 3 * KV_DIM      # q | q_rot | k | k_rot | v  -> 112

# TODO(synk): KVQuantizer / KVQuantizerChannel (fake-quant of the compressed KV
#             cache) and the k_proj_b / v_proj_b decompression path are skipped:
#             with k_bits=v_bits=16 and past_key_value=None they never affect
#             the returned attn_output.


# ------------------------- fused Pallas kernel -------------------------------
def _fused_attn_kernel(x_ref, w_fused_ref, wo_ref, cosq_ref, sinq_ref,
                       cosk_ref, sink_ref, mask_ref, o_ref, *, batch, seq):
    scale = 1.0 / math.sqrt(HEAD_DIM)

    x = x_ref[...]                                                    # (B*S, H)
    # One MXU pass: q | rotate_half(q) | k | rotate_half(k) | v  (rotations
    # pre-folded into the weight columns -> exact).
    fused = jnp.dot(x, w_fused_ref[...],
                    preferred_element_type=jnp.float32)               # (B*S, 112)

    q = fused[:, :Q_DIM]
    q_rh = fused[:, Q_DIM:2 * Q_DIM]
    k_off = 2 * Q_DIM
    k = fused[:, k_off:k_off + KV_DIM]
    k_rh = fused[:, k_off + KV_DIM:k_off + 2 * KV_DIM]
    v = fused[:, k_off + 2 * KV_DIM:k_off + 3 * KV_DIM]

    # RoPE: pure VPU elementwise (rotate-half already materialized above).
    q_rot = q * cosq_ref[...] + q_rh * sinq_ref[...]                  # (B*S, nH*D)
    k_rot = k * cosk_ref[...] + k_rh * sink_ref[...]                  # (B*S, nKV*D)

    q3 = q_rot.reshape(batch, seq, Q_DIM)
    k3 = k_rot.reshape(batch, seq, KV_DIM)
    v3 = v.reshape(batch, seq, KV_DIM)
    mask = mask_ref[...]                                              # (B, S, S)

    head_out = []
    for h in range(NUM_HEADS):
        g = h // NUM_KV_GROUPS                                        # GQA kv head
        qh = q3[:, :, h * HEAD_DIM:(h + 1) * HEAD_DIM]                # (B, S, D)
        kh = k3[:, :, g * HEAD_DIM:(g + 1) * HEAD_DIM]
        vh = v3[:, :, g * HEAD_DIM:(g + 1) * HEAD_DIM]
        s = jnp.einsum('bqd,bkd->bqk', qh, kh,
                       preferred_element_type=jnp.float32) * scale + mask
        s = s - jnp.max(s, axis=-1, keepdims=True)                    # fp32 softmax
        p = jnp.exp(s)
        p = p * pl.reciprocal(jnp.sum(p, axis=-1, keepdims=True), approx=True)
        head_out.append(jnp.einsum('bqk,bkd->bqd', p, vh,
                                   preferred_element_type=jnp.float32))
    attn = jnp.concatenate(head_out, axis=-1).reshape(batch * seq, Q_DIM)

    o_ref[...] = jnp.dot(attn, wo_ref[...],
                         preferred_element_type=jnp.float32).astype(o_ref.dtype)


def _vmem_spec(shape):
    zeros = (0,) * len(shape)
    return pl.BlockSpec(shape, lambda zeros=zeros: zeros)


def forward(consts, hidden_states, attention_mask):
    """hidden_states: (B, S, H); attention_mask: additive (B, 1, S, S)."""
    B, S, H = hidden_states.shape
    x2d = hidden_states.reshape(B * S, H)
    mask3d = attention_mask.reshape(B, S, S)
    kernel = functools.partial(_fused_attn_kernel, batch=B, seq=S)
    args = (x2d, consts["w_fused"], consts["wo"],
            consts["cos_q"], consts["sin_q"], consts["cos_k"], consts["sin_k"],
            mask3d)
    out2d = pl.pallas_call(
        kernel,
        out_shape=jax.ShapeDtypeStruct((B * S, H), jnp.float32),
        in_specs=[_vmem_spec(a.shape) for a in args],
        out_specs=_vmem_spec((B * S, H)),
    )(*args)
    return out2d.reshape(B, S, H)


# --------------------- one-time derived constants -----------------------------
def make_rotary(seq_len, dim, theta):
    inv_freq = 1.0 / (theta ** (jnp.arange(0, dim, 2, dtype=jnp.float32) / dim))
    t = jnp.arange(seq_len, dtype=jnp.float32)
    freqs = jnp.outer(t, inv_freq)                       # (S, D/2)
    emb = jnp.concatenate([freqs, freqs], axis=-1)       # (S, D)
    return jnp.cos(emb), jnp.sin(emb)


def rotate_half_matrix(d):
    """R such that x @ R == concat([-x[:, d/2:], x[:, :d/2]], axis=-1) (exact)."""
    half = d // 2
    idx = jnp.arange(half)
    r = jnp.zeros((d, d), jnp.float32)
    r = r.at[idx + half, idx].set(-1.0)
    r = r.at[idx, idx + half].set(1.0)
    return r


def precompute_constants(params, batch, seq_len):
    """Per-model-load constants for the fused kernel (amortized in a real model)."""
    cos, sin = make_rotary(seq_len, HEAD_DIM, ROPE_THETA)            # (S, D)
    r = rotate_half_matrix(HEAD_DIM)
    rq = jnp.kron(jnp.eye(NUM_HEADS, dtype=jnp.float32), r)          # (nH*D, nH*D)
    rk = jnp.kron(jnp.eye(NUM_KV_HEADS, dtype=jnp.float32), r)       # (nKV*D, nKV*D)
    wq = params["wq"]
    wk_o = params["wk_a"][:, :KV_DIM]   # 'origin' columns only (compressed cols feed
    wv_o = params["wv_a"][:, :KV_DIM]   # the absent KV cache)
    return {
        # fused projection: q | rotate_half(q) | k | rotate_half(k) | v — folding
        # the 0/+-1 rotate-half into the weight columns is bit-exact.
        "w_fused": jnp.concatenate(
            [wq, wq @ rq, wk_o, wk_o @ rk, wv_o], axis=1),           # (H, 112)
        "wo": params["wo"],
        # cos/sin tiled to the flat (B*S, heads*D) layout used in-kernel
        "cos_q": jnp.tile(cos, (batch, NUM_HEADS)),                  # (B*S, nH*D)
        "sin_q": jnp.tile(sin, (batch, NUM_HEADS)),
        "cos_k": jnp.tile(cos, (batch, NUM_KV_HEADS)),               # (B*S, nKV*D)
        "sin_k": jnp.tile(sin, (batch, NUM_KV_HEADS)),
    }


def init_params(key):
    ks = jax.random.split(key, 6)
    scale = 0.02
    return {
        "wq": scale * jax.random.normal(ks[0], (HIDDEN, NUM_HEADS * HEAD_DIM), jnp.float32),
        "wk_a": scale * jax.random.normal(ks[1], (HIDDEN, KV_DIM + K_COMP_DIM), jnp.float32),
        "wv_a": scale * jax.random.normal(ks[2], (HIDDEN, KV_DIM + V_COMP_DIM), jnp.float32),
        # k_proj_b / v_proj_b: only used to decompress the KV cache (unused here)
        "wk_b": scale * jax.random.normal(ks[3], (K_COMP_DIM, KV_DIM), jnp.float32),
        "wv_b": scale * jax.random.normal(ks[4], (V_COMP_DIM, KV_DIM), jnp.float32),
        "wo": scale * jax.random.normal(ks[5], (HIDDEN, HIDDEN), jnp.float32),
    }


# -------------------------- pure-JAX reference --------------------------------
def forward_ref(params, hidden_states, attention_mask):
    B, S, H = hidden_states.shape
    x = hidden_states
    q = (x @ params["wq"]).reshape(B, S, NUM_HEADS, HEAD_DIM).transpose(0, 2, 1, 3)
    k_a = x @ params["wk_a"]
    v_a = x @ params["wv_a"]
    k = k_a[..., :KV_DIM].reshape(B, S, NUM_KV_HEADS, HEAD_DIM).transpose(0, 2, 1, 3)
    v = v_a[..., :KV_DIM].reshape(B, S, NUM_KV_HEADS, HEAD_DIM).transpose(0, 2, 1, 3)

    cos, sin = make_rotary(S, HEAD_DIM, ROPE_THETA)

    def rope(t):
        half = HEAD_DIM // 2
        rot = jnp.concatenate([-t[..., half:], t[..., :half]], axis=-1)
        return t * cos[None, None] + rot * sin[None, None]

    q, k = rope(q), rope(k)
    k = jnp.repeat(k, NUM_KV_GROUPS, axis=1)
    v = jnp.repeat(v, NUM_KV_GROUPS, axis=1)

    s = jnp.einsum("bhqd,bhkd->bhqk", q, k) / math.sqrt(HEAD_DIM) + attention_mask
    p = jax.nn.softmax(s.astype(jnp.float32), axis=-1)
    o = jnp.einsum("bhqk,bhkd->bhqd", p, v)
    o = o.transpose(0, 2, 1, 3).reshape(B, S, H)
    return o @ params["wo"]


# ------------------------------- main -----------------------------------------
if __name__ == "__main__":
    key = jax.random.PRNGKey(0)
    k_param, k_x = jax.random.split(key)
    params = init_params(k_param)
    consts = precompute_constants(params, BATCH, SEQ)

    hidden_states = jax.random.normal(k_x, (BATCH, SEQ, HIDDEN), jnp.float32)

    # additive causal attention mask, shape (B, 1, S, S) (module convention)
    row = jnp.arange(SEQ)[:, None]
    col = jnp.arange(SEQ)[None, :]
    neg = jnp.asarray(-1e9, jnp.float32)
    causal = jnp.where(col <= row, 0.0, neg).astype(jnp.float32)
    attention_mask = jnp.broadcast_to(causal[None, None], (BATCH, 1, SEQ, SEQ))

    out = forward(consts, hidden_states, attention_mask)
    out = jax.block_until_ready(out)

    ref = forward_ref(params, hidden_states, attention_mask)
    assert out.shape == (BATCH, SEQ, HIDDEN)
    assert jnp.allclose(out, ref, atol=1e-4, rtol=1e-4), "mismatch vs reference"

    print("KERNEL_OK")
</pallas_src>

<mosaic_0001>
module attributes {stable_mosaic.version = 11 : i64} {
  func.func @_fused_attn_kernel(%arg0: memref<16x32xf32, #tpu.memory_space<vmem>>, %arg1: memref<32x112xf32, #tpu.memory_space<vmem>>, %arg2: memref<32x32xf32, #tpu.memory_space<vmem>>, %arg3: memref<16x32xf32, #tpu.memory_space<vmem>>, %arg4: memref<16x32xf32, #tpu.memory_space<vmem>>, %arg5: memref<16x16xf32, #tpu.memory_space<vmem>>, %arg6: memref<16x16xf32, #tpu.memory_space<vmem>>, %arg7: memref<2x8x8xf32, #tpu.memory_space<vmem>>, %arg8: memref<16x32xf32, #tpu.memory_space<vmem>>) attributes {dimension_semantics = [], scalar_prefetch = 0 : i64, scratch_operands = 0 : i64, tpu.core_type = #tpu.core_type<tc>} {
    %c0 = arith.constant 0 : index
    %c0_0 = arith.constant 0 : index
    %0 = vector.load %arg0[%c0, %c0_0] : memref<16x32xf32, #tpu.memory_space<vmem>>, vector<16x32xf32>
    %c0_1 = arith.constant 0 : index
    %c0_2 = arith.constant 0 : index
    %1 = vector.load %arg1[%c0_1, %c0_2] : memref<32x112xf32, #tpu.memory_space<vmem>>, vector<32x112xf32>
    %cst = arith.constant dense<0.000000e+00> : vector<16x112xf32>
    %2 = tpu.matmul %0, %1, %cst {dimension_numbers = #tpu.dot_dimension_numbers<[1], [0], [0], [1], [0, 0, 1, 1], [], []>} : vector<16x32xf32>, vector<32x112xf32>, vector<16x112xf32> -> vector<16x112xf32>
    %3 = vector.extract_strided_slice %2 {offsets = [0, 0], sizes = [16, 32], strides = [1, 1]} : vector<16x112xf32> to vector<16x32xf32>
    %4 = vector.extract_strided_slice %2 {offsets = [0, 32], sizes = [16, 32], strides = [1, 1]} : vector<16x112xf32> to vector<16x32xf32>
    %5 = vector.extract_strided_slice %2 {offsets = [0, 64], sizes = [16, 16], strides = [1, 1]} : vector<16x112xf32> to vector<16x16xf32>
    %6 = vector.extract_strided_slice %2 {offsets = [0, 80], sizes = [16, 16], strides = [1, 1]} : vector<16x112xf32> to vector<16x16xf32>
    %7 = vector.extract_strided_slice %2 {offsets = [0, 96], sizes = [16, 16], strides = [1, 1]} : vector<16x112xf32> to vector<16x16xf32>
    %c0_3 = arith.constant 0 : index
    %c0_4 = arith.constant 0 : index
    %8 = vector.load %arg3[%c0_3, %c0_4] : memref<16x32xf32, #tpu.memory_space<vmem>>, vector<16x32xf32>
    %9 = arith.mulf %3, %8 : vector<16x32xf32>
    %c0_5 = arith.constant 0 : index
    %c0_6 = arith.constant 0 : index
    %10 = vector.load %arg4[%c0_5, %c0_6] : memref<16x32xf32, #tpu.memory_space<vmem>>, vector<16x32xf32>
    %11 = arith.mulf %4, %10 : vector<16x32xf32>
    %12 = arith.addf %9, %11 : vector<16x32xf32>
    %c0_7 = arith.constant 0 : index
    %c0_8 = arith.constant 0 : index
    %13 = vector.load %arg5[%c0_7, %c0_8] : memref<16x16xf32, #tpu.memory_space<vmem>>, vector<16x16xf32>
    %14 = arith.mulf %5, %13 : vector<16x16xf32>
    %c0_9 = arith.constant 0 : index
    %c0_10 = arith.constant 0 : index
    %15 = vector.load %arg6[%c0_9, %c0_10] : memref<16x16xf32, #tpu.memory_space<vmem>>, vector<16x16xf32>
    %16 = arith.mulf %6, %15 : vector<16x16xf32>
    %17 = arith.addf %14, %16 : vector<16x16xf32>
    %18 = vector.shape_cast %12 : vector<16x32xf32> to vector<2x8x32xf32>
    %19 = vector.shape_cast %17 : vector<16x16xf32> to vector<2x8x16xf32>
    %20 = vector.shape_cast %7 : vector<16x16xf32> to vector<2x8x16xf32>
    %c0_11 = arith.constant 0 : index
    %c0_12 = arith.constant 0 : index
    %c0_13 = arith.constant 0 : index
    %21 = vector.load %arg7[%c0_11, %c0_12, %c0_13] : memref<2x8x8xf32, #tpu.memory_space<vmem>>, vector<2x8x8xf32>
    %22 = vector.extract_strided_slice %18 {offsets = [0, 0, 0], sizes = [2, 8, 8], strides = [1, 1, 1]} : vector<2x8x32xf32> to vector<2x8x8xf32>
    %23 = vector.extract_strided_slice %19 {offsets = [0, 0, 0], sizes = [2, 8, 8], strides = [1, 1, 1]} : vector<2x8x16xf32> to vector<2x8x8xf32>
    %24 = vector.extract_strided_slice %20 {offsets = [0, 0, 0], sizes = [2, 8, 8], strides = [1, 1, 1]} : vector<2x8x16xf32> to vector<2x8x8xf32>
    "tpu.trace_start"() <{level = 10 : i32, message = "bqd,bkd->bqk"}> : () -> ()
    %cst_14 = arith.constant dense<0.000000e+00> : vector<2x8x8xf32>
    %25 = tpu.matmul %22, %23, %cst_14 {dimension_numbers = #tpu.dot_dimension_numbers<[2], [2], [1], [1], [0, 0, 0, 1, 1, 1], [0], [0]>} : vector<2x8x8xf32>, vector<2x8x8xf32>, vector<2x8x8xf32> -> vector<2x8x8xf32>
    "tpu.trace_stop"() : () -> ()
    %cst_15 = arith.constant 0.353553385 : f32
    %26 = vector.broadcast %cst_15 : f32 to vector<2x8x8xf32>
    %27 = arith.mulf %25, %26 : vector<2x8x8xf32>
    %28 = arith.addf %27, %21 : vector<2x8x8xf32>
    %cst_16 = arith.constant dense<0xFF800000> : vector<2x8xf32>
    %29 = vector.multi_reduction <maximumf>, %28, %cst_16 [2] : vector<2x8x8xf32> to vector<2x8xf32>
    %30 = vector.shape_cast %29 : vector<2x8xf32> to vector<2x8x1xf32>
    %31 = vector.broadcast %30 : vector<2x8x1xf32> to vector<2x8x8xf32>
    %32 = arith.subf %28, %31 : vector<2x8x8xf32>
    %33 = math.exp %32 : vector<2x8x8xf32>
    %cst_17 = arith.constant dense<0.000000e+00> : vector<2x8xf32>
    %34 = vector.multi_reduction <add>, %33, %cst_17 [2] : vector<2x8x8xf32> to vector<2x8xf32>
    %35 = vector.shape_cast %34 : vector<2x8xf32> to vector<2x8x1xf32>
    %36 = tpu.reciprocal %35 {approx = true} : vector<2x8x1xf32> -> vector<2x8x1xf32>
    %37 = vector.broadcast %36 : vector<2x8x1xf32> to vector<2x8x8xf32>
    %38 = arith.mulf %33, %37 : vector<2x8x8xf32>
    "tpu.trace_start"() <{level = 10 : i32, message = "bqk,bkd->bqd"}> : () -> ()
    %cst_18 = arith.constant dense<0.000000e+00> : vector<2x8x8xf32>
    %39 = tpu.matmul %38, %24, %cst_18 {dimension_numbers = #tpu.dot_dimension_numbers<[2], [1], [1], [2], [0, 0, 0, 1, 1, 2], [0], [0]>} : vector<2x8x8xf32>, vector<2x8x8xf32>, vector<2x8x8xf32> -> vector<2x8x8xf32>
    "tpu.trace_stop"() : () -> ()
    %40 = vector.extract_strided_slice %18 {offsets = [0, 0, 8], sizes = [2, 8, 8], strides = [1, 1, 1]} : vector<2x8x32xf32> to vector<2x8x8xf32>
    %41 = vector.extract_strided_slice %19 {offsets = [0, 0, 0], sizes = [2, 8, 8], strides = [1, 1, 1]} : vector<2x8x16xf32> to vector<2x8x8xf32>
    %42 = vector.extract_strided_slice %20 {offsets = [0, 0, 0], sizes = [2, 8, 8], strides = [1, 1, 1]} : vector<2x8x16xf32> to vector<2x8x8xf32>
    "tpu.trace_start"() <{level = 10 : i32, message = "bqd,bkd->bqk"}> : () -> ()
    %cst_19 = arith.constant dense<0.000000e+00> : vector<2x8x8xf32>
    %43 = tpu.matmul %40, %41, %cst_19 {dimension_numbers = #tpu.dot_dimension_numbers<[2], [2], [1], [1], [0, 0, 0, 1, 1, 1], [0], [0]>} : vector<2x8x8xf32>, vector<2x8x8xf32>, vector<2x8x8xf32> -> vector<2x8x8xf32>
    "tpu.trace_stop"() : () -> ()
    %cst_20 = arith.constant 0.353553385 : f32
    %44 = vector.broadcast %cst_20 : f32 to vector<2x8x8xf32>
    %45 = arith.mulf %43, %44 : vector<2x8x8xf32>
    %46 = arith.addf %45, %21 : vector<2x8x8xf32>
    %cst_21 = arith.constant dense<0xFF800000> : vector<2x8xf32>
    %47 = vector.multi_reduction <maximumf>, %46, %cst_21 [2] : vector<2x8x8xf32> to vector<2x8xf32>
    %48 = vector.shape_cast %47 : vector<2x8xf32> to vector<2x8x1xf32>
    %49 = vector.broadcast %48 : vector<2x8x1xf32> to vector<2x8x8xf32>
    %50 = arith.subf %46, %49 : vector<2x8x8xf32>
    %51 = math.exp %50 : vector<2x8x8xf32>
    %cst_22 = arith.constant dense<0.000000e+00> : vector<2x8xf32>
    %52 = vector.multi_reduction <add>, %51, %cst_22 [2] : vector<2x8x8xf32> to vector<2x8xf32>
    %53 = vector.shape_cast %52 : vector<2x8xf32> to vector<2x8x1xf32>
    %54 = tpu.reciprocal %53 {approx = true} : vector<2x8x1xf32> -> vector<2x8x1xf32>
    %55 = vector.broadcast %54 : vector<2x8x1xf32> to vector<2x8x8xf32>
    %56 = arith.mulf %51, %55 : vector<2x8x8xf32>
    "tpu.trace_start"() <{level = 10 : i32, message = "bqk,bkd->bqd"}> : () -> ()
    %cst_23 = arith.constant dense<0.000000e+00> : vector<2x8x8xf32>
    %57 = tpu.matmul %56, %42, %cst_23 {dimension_numbers = #tpu.dot_dimension_numbers<[2], [1], [1], [2], [0, 0, 0, 1, 1, 2], [0], [0]>} : vector<2x8x8xf32>, vector<2x8x8xf32>, vector<2x8x8xf32> -> vector<2x8x8xf32>
    "tpu.trace_stop"() : () -> ()
    %58 = vector.extract_strided_slice %18 {offsets = [0, 0, 16], sizes = [2, 8, 8], strides = [1, 1, 1]} : vector<2x8x32xf32> to vector<2x8x8xf32>
    %59 = vector.extract_strided_slice %19 {offsets = [0, 0, 8], sizes = [2, 8, 8], strides = [1, 1, 1]} : vector<2x8x16xf32> to vector<2x8x8xf32>
    %60 = vector.extract_strided_slice %20 {offsets = [0, 0, 8], sizes = [2, 8, 8], strides = [1, 1, 1]} : vector<2x8x16xf32> to vector<2x8x8xf32>
    "tpu.trace_start"() <{level = 10 : i32, message = "bqd,bkd->bqk"}> : () -> ()
    %cst_24 = arith.constant dense<0.000000e+00> : vector<2x8x8xf32>
    %61 = tpu.matmul %58, %59, %cst_24 {dimension_numbers = #tpu.dot_dimension_numbers<[2], [2], [1], [1], [0, 0, 0, 1, 1, 1], [0], [0]>} : vector<2x8x8xf32>, vector<2x8x8xf32>, vector<2x8x8xf32> -> vector<2x8x8xf32>
    "tpu.trace_stop"() : () -> ()
    %cst_25 = arith.constant 0.353553385 : f32
    %62 = vector.broadcast %cst_25 : f32 to vector<2x8x8xf32>
    %63 = arith.mulf %61, %62 : vector<2x8x8xf32>
    %64 = arith.addf %63, %21 : vector<2x8x8xf32>
    %cst_26 = arith.constant dense<0xFF800000> : vector<2x8xf32>
    %65 = vector.multi_reduction <maximumf>, %64, %cst_26 [2] : vector<2x8x8xf32> to vector<2x8xf32>
    %66 = vector.shape_cast %65 : vector<2x8xf32> to vector<2x8x1xf32>
    %67 = vector.broadcast %66 : vector<2x8x1xf32> to vector<2x8x8xf32>
    %68 = arith.subf %64, %67 : vector<2x8x8xf32>
    %69 = math.exp %68 : vector<2x8x8xf32>
    %cst_27 = arith.constant dense<0.000000e+00> : vector<2x8xf32>
    %70 = vector.multi_reduction <add>, %69, %cst_27 [2] : vector<2x8x8xf32> to vector<2x8xf32>
    %71 = vector.shape_cast %70 : vector<2x8xf32> to vector<2x8x1xf32>
    %72 = tpu.reciprocal %71 {approx = true} : vector<2x8x1xf32> -> vector<2x8x1xf32>
    %73 = vector.broadcast %72 : vector<2x8x1xf32> to vector<2x8x8xf32>
    %74 = arith.mulf %69, %73 : vector<2x8x8xf32>
    "tpu.trace_start"() <{level = 10 : i32, message = "bqk,bkd->bqd"}> : () -> ()
    %cst_28 = arith.constant dense<0.000000e+00> : vector<2x8x8xf32>
    %75 = tpu.matmul %74, %60, %cst_28 {dimension_numbers = #tpu.dot_dimension_numbers<[2], [1], [1], [2], [0, 0, 0, 1, 1, 2], [0], [0]>} : vector<2x8x8xf32>, vector<2x8x8xf32>, vector<2x8x8xf32> -> vector<2x8x8xf32>
    "tpu.trace_stop"() : () -> ()
    %76 = vector.extract_strided_slice %18 {offsets = [0, 0, 24], sizes = [2, 8, 8], strides = [1, 1, 1]} : vector<2x8x32xf32> to vector<2x8x8xf32>
    %77 = vector.extract_strided_slice %19 {offsets = [0, 0, 8], sizes = [2, 8, 8], strides = [1, 1, 1]} : vector<2x8x16xf32> to vector<2x8x8xf32>
    %78 = vector.extract_strided_slice %20 {offsets = [0, 0, 8], sizes = [2, 8, 8], strides = [1, 1, 1]} : vector<2x8x16xf32> to vector<2x8x8xf32>
    "tpu.trace_start"() <{level = 10 : i32, message = "bqd,bkd->bqk"}> : () -> ()
    %cst_29 = arith.constant dense<0.000000e+00> : vector<2x8x8xf32>
    %79 = tpu.matmul %76, %77, %cst_29 {dimension_numbers = #tpu.dot_dimension_numbers<[2], [2], [1], [1], [0, 0, 0, 1, 1, 1], [0], [0]>} : vector<2x8x8xf32>, vector<2x8x8xf32>, vector<2x8x8xf32> -> vector<2x8x8xf32>
    "tpu.trace_stop"() : () -> ()
    %cst_30 = arith.constant 0.353553385 : f32
    %80 = vector.broadcast %cst_30 : f32 to vector<2x8x8xf32>
    %81 = arith.mulf %79, %80 : vector<2x8x8xf32>
    %82 = arith.addf %81, %21 : vector<2x8x8xf32>
    %cst_31 = arith.constant dense<0xFF800000> : vector<2x8xf32>
    %83 = vector.multi_reduction <maximumf>, %82, %cst_31 [2] : vector<2x8x8xf32> to vector<2x8xf32>
    %84 = vector.shape_cast %83 : vector<2x8xf32> to vector<2x8x1xf32>
    %85 = vector.broadcast %84 : vector<2x8x1xf32> to vector<2x8x8xf32>
    %86 = arith.subf %82, %85 : vector<2x8x8xf32>
    %87 = math.exp %86 : vector<2x8x8xf32>
    %cst_32 = arith.constant dense<0.000000e+00> : vector<2x8xf32>
    %88 = vector.multi_reduction <add>, %87, %cst_32 [2] : vector<2x8x8xf32> to vector<2x8xf32>
    %89 = vector.shape_cast %88 : vector<2x8xf32> to vector<2x8x1xf32>
    %90 = tpu.reciprocal %89 {approx = true} : vector<2x8x1xf32> -> vector<2x8x1xf32>
    %91 = vector.broadcast %90 : vector<2x8x1xf32> to vector<2x8x8xf32>
    %92 = arith.mulf %87, %91 : vector<2x8x8xf32>
    "tpu.trace_start"() <{level = 10 : i32, message = "bqk,bkd->bqd"}> : () -> ()
    %cst_33 = arith.constant dense<0.000000e+00> : vector<2x8x8xf32>
    %93 = tpu.matmul %92, %78, %cst_33 {dimension_numbers = #tpu.dot_dimension_numbers<[2], [1], [1], [2], [0, 0, 0, 1, 1, 2], [0], [0]>} : vector<2x8x8xf32>, vector<2x8x8xf32>, vector<2x8x8xf32> -> vector<2x8x8xf32>
    "tpu.trace_stop"() : () -> ()
    %94 = tpu.concatenate %39, %57, %75, %93 in 2 : vector<2x8x8xf32>, vector<2x8x8xf32>, vector<2x8x8xf32>, vector<2x8x8xf32> -> vector<2x8x32xf32>
    %95 = vector.shape_cast %94 : vector<2x8x32xf32> to vector<16x32xf32>
    %c0_34 = arith.constant 0 : index
    %c0_35 = arith.constant 0 : index
    %96 = vector.load %arg2[%c0_34, %c0_35] : memref<32x32xf32, #tpu.memory_space<vmem>>, vector<32x32xf32>
    %cst_36 = arith.constant dense<0.000000e+00> : vector<16x32xf32>
    %97 = tpu.matmul %95, %96, %cst_36 {dimension_numbers = #tpu.dot_dimension_numbers<[1], [0], [0], [1], [0, 0, 1, 1], [], []>} : vector<16x32xf32>, vector<32x32xf32>, vector<16x32xf32> -> vector<16x32xf32>
    %c0_37 = arith.constant 0 : index
    %c0_38 = arith.constant 0 : index
    %98 = vector.load %arg8[%c0_37, %c0_38] : memref<16x32xf32, #tpu.memory_space<vmem>>, vector<16x32xf32>
    tpu.vector_store %arg8[%c0_37, %c0_38], %97 {strides = array<i32>} : memref<16x32xf32, #tpu.memory_space<vmem>>, vector<16x32xf32>,
    return
  }
}

</mosaic_0001>

<llo_original>
// kernel: tpu_custom_call.1
$region0: #{tpu_custom_call.1}
  #allocation0 [shape = 'u32[]', space=smem, size = 0x4, offset = 0x4, fixed_abs, tag = 'smem constant byte address 0x4 - core index']
  #allocation1 [shape = 'u32[144,128]{1,0:T(1,128)}', space=vmem, size = 0x12000, scoped, tag = 'internal scratch']
  %s0 = inlined_call_operand.hbm [shape: f32[16,32], index: 0, kind: input, shape index: {}]
  %s1 = inlined_call_operand.hbm [shape: f32[32,112], index: 1, kind: input, shape index: {}]
  %s2 = inlined_call_operand.hbm [shape: f32[32,32], index: 2, kind: input, shape index: {}]
  %s3 = inlined_call_operand.hbm [shape: f32[16,32], index: 3, kind: input, shape index: {}]
  %s4 = inlined_call_operand.hbm [shape: f32[16,32], index: 4, kind: input, shape index: {}]
  %s5 = inlined_call_operand.vmem [shape: f32[16,16], index: 5, kind: input, shape index: {}]
  %s6 = inlined_call_operand.hbm [shape: f32[16,16], index: 6, kind: input, shape index: {}]
  %s7 = inlined_call_operand.hbm [shape: f32[2,8,8], index: 7, kind: input, shape index: {}]
  %s8 = inlined_call_operand.hbm [shape: f32[16,32], index: 8, kind: output, shape index: {}]
  %s9 = sld [smem:[#allocation0]]
  $region70: #{tpu_custom_call.1} parent=0
    _
  %s11 = ssub.s32 1, %s9
  %s12 = scalar_select 0, %s11, %s9
  $region1: #{tpu_custom_call.1} parent=0
    #allocation2 [shape = 'u8[8192]{0}', space=vmem, size = 0x2000, scoped, tag = 'input window, operand 0, single buffered']
    #allocation3 [shape = 's32[1]{0}', space=sflag, size = 0x4, scoped, tag = 'scoped memory for tpu_custom_call.1']
    #allocation4 [shape = 's32[1]{0}', space=sflag, size = 0x4, scoped, tag = 'scoped memory for tpu_custom_call.1']
    #allocation5 [shape = 'u8[16384]{0}', space=vmem, size = 0x4000, scoped, tag = 'input window, operand 1, single buffered']
    #allocation6 [shape = 's32[1]{0}', space=sflag, size = 0x4, scoped, tag = 'scoped memory for tpu_custom_call.1']
    #allocation7 [shape = 'u8[16384]{0}', space=vmem, size = 0x4000, scoped, tag = 'input window, operand 2, single buffered']
    #allocation8 [shape = 'u8[8192]{0}', space=vmem, size = 0x2000, scoped, tag = 'input window, operand 3, single buffered']
    #allocation9 [shape = 's32[1]{0}', space=sflag, size = 0x4, scoped, tag = 'scoped memory for tpu_custom_call.1']
    #allocation10 [shape = 'u8[8192]{0}', space=vmem, size = 0x2000, scoped, tag = 'input window, operand 4, single buffered']
    #allocation11 [shape = 'u8[8192]{0}', space=vmem, size = 0x2000, scoped, tag = 'input window, operand 6, single buffered']
    #allocation12 [shape = 's32[1]{0}', space=sflag, size = 0x4, scoped, tag = 'scoped memory for tpu_custom_call.1']
    #allocation13 [shape = 'u8[8192]{0}', space=vmem, size = 0x2000, scoped, tag = 'input window, operand 7, single buffered']
    #allocation14 [shape = 'u8[8192]{0}', space=vmem, size = 0x2000, scoped, tag = 'output window, operand 0, single buffered']
    %13 = vsyncpa [#allocation3], 0
    %14 = vsyncpa [#allocation6], 0
    %15 = vsyncpa [#allocation9], 0
    %16 = vsyncpa [#allocation12], 0
    %17 = vsyncpa [#allocation4], 0
    // Predicated region
    $region2: #{tpu_custom_call.1} parent=1 // pred_check
      _
    $region3: #{tpu_custom_call.1} parent=1 // pred_check_branch
      %19 = sbr.rel (0) target = $region5
    $region4: #{tpu_custom_call.1} parent=1 // pred_region
      %s21 = ssub.s32 256, 256
      %22 = vsyncadd [#allocation3], %s21
      %s23 = sshll.u32 [#allocation2], 4
      %s24 = int_to_ptr.vmem [resolvable:$true] %s23
      %29 = dma.hbm_to_vmem [thread:$0]  %s0, 256, %s24, [#allocation3], 128, 128, 8
    $region5: #{tpu_custom_call.1} parent=1 // pred_fallthru
      _
    // Predicated region
    $region6: #{tpu_custom_call.1} parent=1 // pred_check
      _
    $region7: #{tpu_custom_call.1} parent=1 // pred_check_branch
      %31 = sbr.rel (0) target = $region9
    $region8: #{tpu_custom_call.1} parent=1 // pred_region
      %s33 = ssub.s32 512, 512
      %34 = vsyncadd [#allocation6], %s33
      %s35 = sshll.u32 [#allocation5], 4
      %s36 = int_to_ptr.vmem [resolvable:$true] %s35
      %41 = dma.hbm_to_vmem [thread:$0]  %s1, 512, %s36, [#allocation6], 128, 128, 8
    $region9: #{tpu_custom_call.1} parent=1 // pred_fallthru
      _
    // Predicated region
    $region10: #{tpu_custom_call.1} parent=1 // pred_check
      _
    $region11: #{tpu_custom_call.1} parent=1 // pred_check_branch
      %43 = sbr.rel (0) target = $region13
    $region12: #{tpu_custom_call.1} parent=1 // pred_region
      %s45 = ssub.s32 512, 512
      %46 = vsyncadd [#allocation6], %s45
      %s47 = sshll.u32 [#allocation7], 4
      %s48 = int_to_ptr.vmem [resolvable:$true] %s47
      %53 = dma.hbm_to_vmem [thread:$0]  %s2, 512, %s48, [#allocation6], 128, 128, 8
    $region13: #{tpu_custom_call.1} parent=1 // pred_fallthru
      _
    // Predicated region
    $region14: #{tpu_custom_call.1} parent=1 // pred_check
      _
    $region15: #{tpu_custom_call.1} parent=1 // pred_check_branch
      %55 = sbr.rel (0) target = $region17
    $region16: #{tpu_custom_call.1} parent=1 // pred_region
      %s57 = ssub.s32 256, 256
      %58 = vsyncadd [#allocation9], %s57
      %s59 = sshll.u32 [#allocation8], 4
      %s60 = int_to_ptr.vmem [resolvable:$true] %s59
      %65 = dma.hbm_to_vmem [thread:$0]  %s3, 256, %s60, [#allocation9], 128, 128, 8
    $region17: #{tpu_custom_call.1} parent=1 // pred_fallthru
      _
    // Predicated region
    $region18: #{tpu_custom_call.1} parent=1 // pred_check
      _
    $region19: #{tpu_custom_call.1} parent=1 // pred_check_branch
      %67 = sbr.rel (0) target = $region21
    $region20: #{tpu_custom_call.1} parent=1 // pred_region
      %s69 = ssub.s32 256, 256
      %70 = vsyncadd [#allocation9], %s69
      %s71 = sshll.u32 [#allocation10], 4
      %s72 = int_to_ptr.vmem [resolvable:$true] %s71
      %77 = dma.hbm_to_vmem [thread:$0]  %s4, 256, %s72, [#allocation9], 128, 128, 8
    $region21: #{tpu_custom_call.1} parent=1 // pred_fallthru
      _
    // Predicated region
    $region22: #{tpu_custom_call.1} parent=1 // pred_check
      _
    $region23: #{tpu_custom_call.1} parent=1 // pred_check_branch
      %79 = sbr.rel (0) target = $region25
    $region24: #{tpu_custom_call.1} parent=1 // pred_region
      _
    $region25: #{tpu_custom_call.1} parent=1 // pred_fallthru
      _
    // Predicated region
    $region26: #{tpu_custom_call.1} parent=1 // pred_check
      _
    $region27: #{tpu_custom_call.1} parent=1 // pred_check_branch
      %81 = sbr.rel (0) target = $region29
    $region28: #{tpu_custom_call.1} parent=1 // pred_region
      %s83 = ssub.s32 256, 256
      %84 = vsyncadd [#allocation12], %s83
      %s85 = sshll.u32 [#allocation11], 4
      %s86 = int_to_ptr.vmem [resolvable:$true] %s85
      %91 = dma.hbm_to_vmem [thread:$0]  %s6, 256, %s86, [#allocation12], 128, 128, 8
    $region29: #{tpu_custom_call.1} parent=1 // pred_fallthru
      _
    // Predicated region
    $region30: #{tpu_custom_call.1} parent=1 // pred_check
      _
    $region31: #{tpu_custom_call.1} parent=1 // pred_check_branch
      %93 = sbr.rel (0) target = $region33
    $region32: #{tpu_custom_call.1} parent=1 // pred_region
      %s95 = ssub.s32 256, 256
      %96 = vsyncadd [#allocation12], %s95
      %s97 = sshll.u32 [#allocation13], 4
      %s98 = int_to_ptr.vmem [resolvable:$true] %s97
      %103 = dma.hbm_to_vmem [thread:$0]  %s7, 256, %s98, [#allocation12], 128, 128, 8
    $region33: #{tpu_custom_call.1} parent=1 // pred_fallthru
      _
    // Predicated region
    $region34: #{tpu_custom_call.1} parent=1 // pred_check
      _
    $region35: #{tpu_custom_call.1} parent=1 // pred_check_branch
      %105 = sbr.rel (0) target = $region37
    $region36: #{tpu_custom_call.1} parent=1 // pred_region
      %106 = dma.done [#allocation3], 256
    $region37: #{tpu_custom_call.1} parent=1 // pred_fallthru
      _
    // Predicated region
    $region38: #{tpu_custom_call.1} parent=1 // pred_check
      _
    $region39: #{tpu_custom_call.1} parent=1 // pred_check_branch
      %108 = sbr.rel (0) target = $region41
    $region40: #{tpu_custom_call.1} parent=1 // pred_region
      %109 = dma.done [#allocation6], 512
    $region41: #{tpu_custom_call.1} parent=1 // pred_fallthru
      _
    // Predicated region
    $region42: #{tpu_custom_call.1} parent=1 // pred_check
      _
    $region43: #{tpu_custom_call.1} parent=1 // pred_check_branch
      %111 = sbr.rel (0) target = $region45
    $region44: #{tpu_custom_call.1} parent=1 // pred_region
      %112 = dma.done [#allocation6], 512
    $region45: #{tpu_custom_call.1} parent=1 // pred_fallthru
      _
    // Predicated region
    $region46: #{tpu_custom_call.1} parent=1 // pred_check
      _
    $region47: #{tpu_custom_call.1} parent=1 // pred_check_branch
      %114 = sbr.rel (0) target = $region49
    $region48: #{tpu_custom_call.1} parent=1 // pred_region
      %115 = dma.done [#allocation9], 256
    $region49: #{tpu_custom_call.1} parent=1 // pred_fallthru
      _
    // Predicated region
    $region50: #{tpu_custom_call.1} parent=1 // pred_check
      _
    $region51: #{tpu_custom_call.1} parent=1 // pred_check_branch
      %117 = sbr.rel (0) target = $region53
    $region52: #{tpu_custom_call.1} parent=1 // pred_region
      %118 = dma.done [#allocation9], 256
    $region53: #{tpu_custom_call.1} parent=1 // pred_fallthru
      _
    // Predicated region
    $region54: #{tpu_custom_call.1} parent=1 // pred_check
      _
    $region55: #{tpu_custom_call.1} parent=1 // pred_check_branch
      %120 = sbr.rel (0) target = $region57
    $region56: #{tpu_custom_call.1} parent=1 // pred_region
      %121 = dma.done [#allocation12], 256
    $region57: #{tpu_custom_call.1} parent=1 // pred_fallthru
      _
    // Predicated region
    $region58: #{tpu_custom_call.1} parent=1 // pred_check
      _
    $region59: #{tpu_custom_call.1} parent=1 // pred_check_branch
      %123 = sbr.rel (0) target = $region61
    $region60: #{tpu_custom_call.1} parent=1 // pred_region
      %124 = dma.done [#allocation12], 256
    $region61: #{tpu_custom_call.1} parent=1 // pred_fallthru
      _
    %v125 = vld [vmem:[#allocation2] sm:$0xff]
    %v126 = vld [vmem:[#allocation2 + $0x8] sm:$0xff]
    %v127 = vld [vmem:[#allocation5] sm:$0xff]
    %v128 = vld [vmem:[#allocation5 + $0x8] sm:$0xff]
    %v129 = vld [vmem:[#allocation5 + $0x10] sm:$0xff]
    %v130 = vld [vmem:[#allocation5 + $0x18] sm:$0xff]
    %vm131 = vcmask 261120
    %v133 = vsel %vm131, %v125, 0
    %v136 = vsel %vm131, %v126, 0
    %138 = vmatprep.subr.mxu0 0.0
    %139 = vmatpush1.msra.mxu0 %v127
    %140 = vmatprep.subr.mxu0 0.0
    %141 = vmatpush1.msra.mxu0 %v128
    %142 = vmatprep.subr.mxu0 0.0
    %143 = vmatpush1.msra.mxu0 %v129
    %144 = vmatprep.subr.mxu0 0.0
    %145 = vmatpush1.msra.mxu0 %v130
    %146 = vmatprep.subr.mxu0 0.0
    %147 = vmatpush1.msra.mxu0 0.0
    %148 = vmatprep.subr.mxu0 0.0
    %149 = vmatpush1.msra.mxu0 0.0
    %150 = vmatprep.subr.mxu0 0.0
    %151 = vmatpush1.msra.mxu0 0.0
    %152 = vmatprep.subr.mxu0 0.0
    %153 = vmatpush1.msra.mxu0 0.0
    %154 = vmatprep.subr.mxu0 0.0
    %155 = vmatpush1.msra.mxu0 0.0
    %156 = vmatprep.subr.mxu0 0.0
    %157 = vmatpush1.msra.mxu0 0.0
    %158 = vmatprep.subr.mxu0 0.0
    %159 = vmatpush1.msra.mxu0 0.0
    %160 = vmatprep.subr.mxu0 0.0
    %161 = vmatpush1.msra.mxu0 0.0
    %162 = vmatprep.subr.mxu0 0.0
    %163 = vmatpush1.msra.mxu0 0.0
    %164 = vmatprep.subr.mxu0 0.0
    %165 = vmatpush1.msra.mxu0 0.0
    %166 = vmatprep.subr.mxu0 0.0
    %167 = vmatpush1.msra.mxu0 0.0
    %168 = vmatprep.subr.mxu0 0.0
    %169 = vmatpush1.msra.mxu0 0.0
    %170 = vmatprep.subr.mxu0 0.0
    %171 = vmatpush1.msra.mxu0 0.0
    %172 = vmatprep.subr.mxu0 0.0
    %173 = vmatpush1.msra.mxu0 0.0
    %174 = vmatprep.subr.mxu0 0.0
    %175 = vmatpush1.msra.mxu0 0.0
    %176 = vmatprep.subr.mxu0 0.0
    %177 = vmatpush1.msra.mxu0 0.0
    %178 = vmatprep.subr.mxu0 0.0
    %179 = vmatpush1.msra.mxu0 0.0
    %180 = vmatprep.subr.mxu0 0.0
    %181 = vmatpush1.msra.mxu0 0.0
    %182 = vmatprep.subr.mxu0 0.0
    %183 = vmatpush1.msra.mxu0 0.0
    %184 = vmatprep.subr.mxu0 0.0
    %185 = vmatpush1.msra.mxu0 0.0
    %186 = vmatprep.subr.mxu0 0.0
    %187 = vmatpush1.msra.mxu0 0.0
    %188 = vmatprep.subr.mxu0 0.0
    %189 = vmatpush1.msra.mxu0 0.0
    %190 = vmatprep.subr.mxu0 0.0
    %191 = vmatpush1.msra.mxu0 0.0
    %192 = vmatprep.subr.mxu0 0.0
    %193 = vmatpush1.msra.mxu0 0.0
    %194 = vmatprep.subr.mxu0 0.0
    %195 = vmatpush1.msra.mxu0 0.0
    %196 = vmatprep.subr.mxu0 0.0
    %197 = vmatpush1.msra.mxu0 0.0
    %198 = vmatprep.subr.mxu0 0.0
    %199 = vmatpush1.msra.mxu0 0.0
    %200 = vmatprep.subr.mxu0 0.0
    %201 = vmatpush1.msra.mxu0 0.0
    %202 = vmatprep.mubr.f32.mxu0 0.0
    %203 = vmatmul.mubr.f32.gmra.mrb[0].mxu0 %v133
    %v204 = vpop.f32.mrb[0].mxu0
    %v205 = vadd.f32 0.0, %v204
    %v206 = vpop.f32.mrb[0].mxu0
    %207 = vmatprep.mubr.f32.mxu0 0.0
    %208 = vmatmul.mubr.f32.gmra.mrb[0].mxu0 %v136
    %v209 = vpop.f32.mrb[0].mxu0
    %v210 = vadd.f32 0.0, %v209
    %v211 = vpop.f32.mrb[0].mxu0
    %212 = vdwg.mxu0
    %v213 = vld [vmem:[#allocation8] sm:$0xff]
    %v214 = vld [vmem:[#allocation8 + $0x8] sm:$0xff]
    %v215 = vmul.f32 %v205, %v213
    %v216 = vmul.f32 %v210, %v214
    %v217 = vld [vmem:[#allocation10] sm:$0xff]
    %v218 = vld [vmem:[#allocation10 + $0x8] sm:$0xff]
    %221 = vrot.lane.b32.xlu0 %v217, 32
    %v222 = vpop.permute.xlu0 %221
    %223 = vrot.lane.b32.xlu0 %v218, 32
    %v224 = vpop.permute.xlu0 %223
    %v227 = vmul.f32 %v205, %v222
    %v228 = vmul.f32 %v210, %v224
    %231 = vrot.lane.b32.xlu0 %v227, 96
    %v232 = vpop.permute.xlu0 %231
    %233 = vrot.lane.b32.xlu0 %v228, 96
    %v234 = vpop.permute.xlu0 %233
    %v237 = vadd.f32 %v215, %v232
    %v238 = vadd.f32 %v216, %v234
    %v239 = vld [vmem:[%s5] sm:$0xff]
    %v240 = vld [vmem:[%s5 + $0x8] sm:$0xff]
    %243 = vrot.lane.b32.xlu0 %v239, 64
    %v244 = vpop.permute.xlu0 %243
    %245 = vrot.lane.b32.xlu0 %v240, 64
    %v246 = vpop.permute.xlu0 %245
    %v249 = vmul.f32 %v205, %v244
    %v250 = vmul.f32 %v210, %v246
    %v251 = vld [vmem:[#allocation11] sm:$0xff]
    %v252 = vld [vmem:[#allocation11 + $0x8] sm:$0xff]
    %255 = vrot.lane.b32.xlu0 %v251, 80
    %v256 = vpop.permute.xlu0 %255
    %257 = vrot.lane.b32.xlu0 %v252, 80
    %v258 = vpop.permute.xlu0 %257
    %v261 = vmul.f32 %v205, %v256
    %v262 = vmul.f32 %v210, %v258
    %265 = vrot.lane.b32.xlu0 %v261, 112
    %v266 = vpop.permute.xlu0 %265
    %267 = vrot.lane.b32.xlu0 %v262, 112
    %v268 = vpop.permute.xlu0 %267
    %v271 = vadd.f32 %v249, %v266
    %v272 = vadd.f32 %v250, %v268
    %v273 = vld [vmem:[#allocation13] sm:$0xff]
    %v274 = vld [vmem:[#allocation13 + $0x8] sm:$0xff]
    %276 = vrot.lane.b32.xlu0 %v271, 64
    %v277 = vpop.permute.xlu0 %276
    %vm278 = vcmask 64512
    %v280 = vsel %vm278, %v237, 0
    %v282 = vsel %vm278, %v277, 0
    %284 = vmatprep.subr.mxu0 0.0
    %285 = vmatpush1.xpose.msra.mxu0 %v282
    %286 = vmatprep.subr.mxu0 0.0
    %287 = vmatpush1.xpose.msra.mxu0 0.0
    %288 = vmatprep.subr.mxu0 0.0
    %289 = vmatpush1.xpose.msra.mxu0 0.0
    %290 = vmatprep.subr.mxu0 0.0
    %291 = vmatpush1.xpose.msra.mxu0 0.0
    %292 = vmatprep.subr.mxu0 0.0
    %293 = vmatpush1.xpose.msra.mxu0 0.0
    %294 = vmatprep.subr.mxu0 0.0
    %295 = vmatpush1.xpose.msra.mxu0 0.0
    %296 = vmatprep.subr.mxu0 0.0
    %297 = vmatpush1.xpose.msra.mxu0 0.0
    %298 = vmatprep.subr.mxu0 0.0
    %299 = vmatpush1.xpose.msra.mxu0 0.0
    %300 = vmatprep.subr.mxu0 0.0
    %301 = vmatpush1.xpose.msra.mxu0 0.0
    %302 = vmatprep.subr.mxu0 0.0
    %303 = vmatpush1.xpose.msra.mxu0 0.0
    %304 = vmatprep.subr.mxu0 0.0
    %305 = vmatpush1.xpose.msra.mxu0 0.0
    %306 = vmatprep.subr.mxu0 0.0
    %307 = vmatpush1.xpose.msra.mxu0 0.0
    %308 = vmatprep.subr.mxu0 0.0
    %309 = vmatpush1.xpose.msra.mxu0 0.0
    %310 = vmatprep.subr.mxu0 0.0
    %311 = vmatpush1.xpose.msra.mxu0 0.0
    %312 = vmatprep.subr.mxu0 0.0
    %313 = vmatpush1.xpose.msra.mxu0 0.0
    %314 = vmatprep.subr.mxu0 0.0
    %315 = vmatpush1.xpose.msra.mxu0 0.0
    %316 = vmatprep.subr.mxu0 0.0
    %317 = vmatpush1.xpose.msra.mxu0 0.0
    %318 = vmatprep.subr.mxu0 0.0
    %319 = vmatpush1.xpose.msra.mxu0 0.0
    %320 = vmatprep.subr.mxu0 0.0
    %321 = vmatpush1.xpose.msra.mxu0 0.0
    %322 = vmatprep.subr.mxu0 0.0
    %323 = vmatpush1.xpose.msra.mxu0 0.0
    %324 = vmatprep.subr.mxu0 0.0
    %325 = vmatpush1.xpose.msra.mxu0 0.0
    %326 = vmatprep.subr.mxu0 0.0
    %327 = vmatpush1.xpose.msra.mxu0 0.0
    %328 = vmatprep.subr.mxu0 0.0
    %329 = vmatpush1.xpose.msra.mxu0 0.0
    %330 = vmatprep.subr.mxu0 0.0
    %331 = vmatpush1.xpose.msra.mxu0 0.0
    %332 = vmatprep.subr.mxu0 0.0
    %333 = vmatpush1.xpose.msra.mxu0 0.0
    %334 = vmatprep.subr.mxu0 0.0
    %335 = vmatpush1.xpose.msra.mxu0 0.0
    %336 = vmatprep.subr.mxu0 0.0
    %337 = vmatpush1.xpose.msra.mxu0 0.0
    %338 = vmatprep.subr.mxu0 0.0
    %339 = vmatpush1.xpose.msra.mxu0 0.0
    %340 = vmatprep.subr.mxu0 0.0
    %341 = vmatpush1.xpose.msra.mxu0 0.0
    %342 = vmatprep.subr.mxu0 0.0
    %343 = vmatpush1.xpose.msra.mxu0 0.0
    %344 = vmatprep.subr.mxu0 0.0
    %345 = vmatpush1.xpose.msra.mxu0 0.0
    %346 = vmatprep.subr.mxu0 0.0
    %347 = vmatpush1.xpose.msra.mxu0 0.0
    %348 = vmatprep.mubr.f32.mxu0 0.0
    %349 = vmatmul.mubr.f32.gmra.mrb[0].mxu0 %v280
    %v350 = vpop.f32.mrb[0].mxu0
    %v351 = vadd.f32 0.0, %v350
    %v352 = vpop.f32.mrb[0].mxu0
    %353 = vdwg.mxu0
    %355 = vrot.lane.b32.xlu0 %v272, 64
    %v356 = vpop.permute.xlu0 %355
    %v358 = vsel %vm278, %v238, 0
    %v360 = vsel %vm278, %v356, 0
    %362 = vmatprep.subr.mxu0 0.0
    %363 = vmatpush1.xpose.msra.mxu0 %v360
    %364 = vmatprep.subr.mxu0 0.0
    %365 = vmatpush1.xpose.msra.mxu0 0.0
    %366 = vmatprep.subr.mxu0 0.0
    %367 = vmatpush1.xpose.msra.mxu0 0.0
    %368 = vmatprep.subr.mxu0 0.0
    %369 = vmatpush1.xpose.msra.mxu0 0.0
    %370 = vmatprep.subr.mxu0 0.0
    %371 = vmatpush1.xpose.msra.mxu0 0.0
    %372 = vmatprep.subr.mxu0 0.0
    %373 = vmatpush1.xpose.msra.mxu0 0.0
    %374 = vmatprep.subr.mxu0 0.0
    %375 = vmatpush1.xpose.msra.mxu0 0.0
    %376 = vmatprep.subr.mxu0 0.0
    %377 = vmatpush1.xpose.msra.mxu0 0.0
    %378 = vmatprep.subr.mxu0 0.0
    %379 = vmatpush1.xpose.msra.mxu0 0.0
    %380 = vmatprep.subr.mxu0 0.0
    %381 = vmatpush1.xpose.msra.mxu0 0.0
    %382 = vmatprep.subr.mxu0 0.0
    %383 = vmatpush1.xpose.msra.mxu0 0.0
    %384 = vmatprep.subr.mxu0 0.0
    %385 = vmatpush1.xpose.msra.mxu0 0.0
    %386 = vmatprep.subr.mxu0 0.0
    %387 = vmatpush1.xpose.msra.mxu0 0.0
    %388 = vmatprep.subr.mxu0 0.0
    %389 = vmatpush1.xpose.msra.mxu0 0.0
    %390 = vmatprep.subr.mxu0 0.0
    %391 = vmatpush1.xpose.msra.mxu0 0.0
    %392 = vmatprep.subr.mxu0 0.0
    %393 = vmatpush1.xpose.msra.mxu0 0.0
    %394 = vmatprep.subr.mxu0 0.0
    %395 = vmatpush1.xpose.msra.mxu0 0.0
    %396 = vmatprep.subr.mxu0 0.0
    %397 = vmatpush1.xpose.msra.mxu0 0.0
    %398 = vmatprep.subr.mxu0 0.0
    %399 = vmatpush1.xpose.msra.mxu0 0.0
    %400 = vmatprep.subr.mxu0 0.0
    %401 = vmatpush1.xpose.msra.mxu0 0.0
    %402 = vmatprep.subr.mxu0 0.0
    %403 = vmatpush1.xpose.msra.mxu0 0.0
    %404 = vmatprep.subr.mxu0 0.0
    %405 = vmatpush1.xpose.msra.mxu0 0.0
    %406 = vmatprep.subr.mxu0 0.0
    %407 = vmatpush1.xpose.msra.mxu0 0.0
    %408 = vmatprep.subr.mxu0 0.0
    %409 = vmatpush1.xpose.msra.mxu0 0.0
    %410 = vmatprep.subr.mxu0 0.0
    %411 = vmatpush1.xpose.msra.mxu0 0.0
    %412 = vmatprep.subr.mxu0 0.0
    %413 = vmatpush1.xpose.msra.mxu0 0.0
    %414 = vmatprep.subr.mxu0 0.0
    %415 = vmatpush1.xpose.msra.mxu0 0.0
    %416 = vmatprep.subr.mxu0 0.0
    %417 = vmatpush1.xpose.msra.mxu0 0.0
    %418 = vmatprep.subr.mxu0 0.0
    %419 = vmatpush1.xpose.msra.mxu0 0.0
    %420 = vmatprep.subr.mxu0 0.0
    %421 = vmatpush1.xpose.msra.mxu0 0.0
    %422 = vmatprep.subr.mxu0 0.0
    %423 = vmatpush1.xpose.msra.mxu0 0.0
    %424 = vmatprep.subr.mxu0 0.0
    %425 = vmatpush1.xpose.msra.mxu0 0.0
    %426 = vmatprep.mubr.f32.mxu0 0.0
    %427 = vmatmul.mubr.f32.gmra.mrb[0].mxu0 %v358
    %v428 = vpop.f32.mrb[0].mxu0
    %v429 = vadd.f32 0.0, %v428
    %v430 = vpop.f32.mrb[0].mxu0
    %431 = vdwg.mxu0
    %v432 = vmul.f32 %v351, 0.35355338
    %v433 = vmul.f32 %v429, 0.35355338
    %v434 = vadd.f32 %v432, %v273
    %v435 = vadd.f32 %v433, %v274
    %v436 = vsel %vm278, %v434, -inf
    %437 = vmax.xlane.f32.xlu0 %v436
    %v438 = vpop.xlane.xlu0 %437
    %v439 = vsel %vm278, %v435, -inf
    %440 = vmax.xlane.f32.xlu0 %v439
    %v441 = vpop.xlane.xlu0 %440
    %v442 = vsub.f32 %v434, %v438
    %v443 = vsub.f32 %v435, %v441
    %v444 = vmul.f32 %v442, 1.442695
    %v445 = vpow.pop %v444
    %v446 = vmul.f32 %v443, 1.442695
    %v447 = vpow.pop %v446
    %v448 = vsel %vm278, %v445, 0.0
    %449 = vadd.xlane.f32.xlu0 %v448
    %v450 = vpop.xlane.xlu0 %449
    %v451 = vsel %vm278, %v447, 0.0
    %452 = vadd.xlane.f32.xlu0 %v451
    %v453 = vpop.xlane.xlu0 %452
    %v454 = vrcp.pop %v450
    %v455 = vrcp.pop %v453
    %v456 = vmul.f32 %v445, %v454
    %v457 = vmul.f32 %v447, %v455
    %459 = vrot.lane.b32.xlu0 %v205, 32
    %v460 = vpop.permute.xlu0 %459
    %v463 = vsel %vm278, %v456, 0
    %465 = vmatprep.subr.mxu0 0.0
    %466 = vmatpush1.msra.mxu0 %v460
    %467 = vmatprep.subr.mxu0 0.0
    %468 = vmatpush1.msra.mxu0 0.0
    %469 = vmatprep.subr.mxu0 0.0
    %470 = vmatpush1.msra.mxu0 0.0
    %471 = vmatprep.subr.mxu0 0.0
    %472 = vmatpush1.msra.mxu0 0.0
    %473 = vmatprep.subr.mxu0 0.0
    %474 = vmatpush1.msra.mxu0 0.0
    %475 = vmatprep.subr.mxu0 0.0
    %476 = vmatpush1.msra.mxu0 0.0
    %477 = vmatprep.subr.mxu0 0.0
    %478 = vmatpush1.msra.mxu0 0.0
    %479 = vmatprep.subr.mxu0 0.0
    %480 = vmatpush1.msra.mxu0 0.0
    %481 = vmatprep.subr.mxu0 0.0
    %482 = vmatpush1.msra.mxu0 0.0
    %483 = vmatprep.subr.mxu0 0.0
    %484 = vmatpush1.msra.mxu0 0.0
    %485 = vmatprep.subr.mxu0 0.0
    %486 = vmatpush1.msra.mxu0 0.0
    %487 = vmatprep.subr.mxu0 0.0
    %488 = vmatpush1.msra.mxu0 0.0
    %489 = vmatprep.subr.mxu0 0.0
    %490 = vmatpush1.msra.mxu0 0.0
    %491 = vmatprep.subr.mxu0 0.0
    %492 = vmatpush1.msra.mxu0 0.0
    %493 = vmatprep.subr.mxu0 0.0
    %494 = vmatpush1.msra.mxu0 0.0
    %495 = vmatprep.subr.mxu0 0.0
    %496 = vmatpush1.msra.mxu0 0.0
    %497 = vmatprep.subr.mxu0 0.0
    %498 = vmatpush1.msra.mxu0 0.0
    %499 = vmatprep.subr.mxu0 0.0
    %500 = vmatpush1.msra.mxu0 0.0
    %501 = vmatprep.subr.mxu0 0.0
    %502 = vmatpush1.msra.mxu0 0.0
    %503 = vmatprep.subr.mxu0 0.0
    %504 = vmatpush1.msra.mxu0 0.0
    %505 = vmatprep.subr.mxu0 0.0
    %506 = vmatpush1.msra.mxu0 0.0
    %507 = vmatprep.subr.mxu0 0.0
    %508 = vmatpush1.msra.mxu0 0.0
    %509 = vmatprep.subr.mxu0 0.0
    %510 = vmatpush1.msra.mxu0 0.0
    %511 = vmatprep.subr.mxu0 0.0
    %512 = vmatpush1.msra.mxu0 0.0
    %513 = vmatprep.subr.mxu0 0.0
    %514 = vmatpush1.msra.mxu0 0.0
    %515 = vmatprep.subr.mxu0 0.0
    %516 = vmatpush1.msra.mxu0 0.0
    %517 = vmatprep.subr.mxu0 0.0
    %518 = vmatpush1.msra.mxu0 0.0
    %519 = vmatprep.subr.mxu0 0.0
    %520 = vmatpush1.msra.mxu0 0.0
    %521 = vmatprep.subr.mxu0 0.0
    %522 = vmatpush1.msra.mxu0 0.0
    %523 = vmatprep.subr.mxu0 0.0
    %524 = vmatpush1.msra.mxu0 0.0
    %525 = vmatprep.subr.mxu0 0.0
    %526 = vmatpush1.msra.mxu0 0.0
    %527 = vmatprep.subr.mxu0 0.0
    %528 = vmatpush1.msra.mxu0 0.0
    %529 = vmatprep.mubr.f32.mxu0 0.0
    %530 = vmatmul.mubr.f32.gmra.mrb[0].mxu0 %v463
    %v531 = vpop.f32.mrb[0].mxu0
    %v532 = vadd.f32 0.0, %v531
    %v533 = vpop.f32.mrb[0].mxu0
    %534 = vdwg.mxu0
    %536 = vrot.lane.b32.xlu0 %v210, 32
    %v537 = vpop.permute.xlu0 %536
    %v540 = vsel %vm278, %v457, 0
    %542 = vmatprep.subr.mxu0 0.0
    %543 = vmatpush1.msra.mxu0 %v537
    %544 = vmatprep.subr.mxu0 0.0
    %545 = vmatpush1.msra.mxu0 0.0
    %546 = vmatprep.subr.mxu0 0.0
    %547 = vmatpush1.msra.mxu0 0.0
    %548 = vmatprep.subr.mxu0 0.0
    %549 = vmatpush1.msra.mxu0 0.0
    %550 = vmatprep.subr.mxu0 0.0
    %551 = vmatpush1.msra.mxu0 0.0
    %552 = vmatprep.subr.mxu0 0.0
    %553 = vmatpush1.msra.mxu0 0.0
    %554 = vmatprep.subr.mxu0 0.0
    %555 = vmatpush1.msra.mxu0 0.0
    %556 = vmatprep.subr.mxu0 0.0
    %557 = vmatpush1.msra.mxu0 0.0
    %558 = vmatprep.subr.mxu0 0.0
    %559 = vmatpush1.msra.mxu0 0.0
    %560 = vmatprep.subr.mxu0 0.0
    %561 = vmatpush1.msra.mxu0 0.0
    %562 = vmatprep.subr.mxu0 0.0
    %563 = vmatpush1.msra.mxu0 0.0
    %564 = vmatprep.subr.mxu0 0.0
    %565 = vmatpush1.msra.mxu0 0.0
    %566 = vmatprep.subr.mxu0 0.0
    %567 = vmatpush1.msra.mxu0 0.0
    %568 = vmatprep.subr.mxu0 0.0
    %569 = vmatpush1.msra.mxu0 0.0
    %570 = vmatprep.subr.mxu0 0.0
    %571 = vmatpush1.msra.mxu0 0.0
    %572 = vmatprep.subr.mxu0 0.0
    %573 = vmatpush1.msra.mxu0 0.0
    %574 = vmatprep.subr.mxu0 0.0
    %575 = vmatpush1.msra.mxu0 0.0
    %576 = vmatprep.subr.mxu0 0.0
    %577 = vmatpush1.msra.mxu0 0.0
    %578 = vmatprep.subr.mxu0 0.0
    %579 = vmatpush1.msra.mxu0 0.0
    %580 = vmatprep.subr.mxu0 0.0
    %581 = vmatpush1.msra.mxu0 0.0
    %582 = vmatprep.subr.mxu0 0.0
    %583 = vmatpush1.msra.mxu0 0.0
    %584 = vmatprep.subr.mxu0 0.0
    %585 = vmatpush1.msra.mxu0 0.0
    %586 = vmatprep.subr.mxu0 0.0
    %587 = vmatpush1.msra.mxu0 0.0
    %588 = vmatprep.subr.mxu0 0.0
    %589 = vmatpush1.msra.mxu0 0.0
    %590 = vmatprep.subr.mxu0 0.0
    %591 = vmatpush1.msra.mxu0 0.0
    %592 = vmatprep.subr.mxu0 0.0
    %593 = vmatpush1.msra.mxu0 0.0
    %594 = vmatprep.subr.mxu0 0.0
    %595 = vmatpush1.msra.mxu0 0.0
    %596 = vmatprep.subr.mxu0 0.0
    %597 = vmatpush1.msra.mxu0 0.0
    %598 = vmatprep.subr.mxu0 0.0
    %599 = vmatpush1.msra.mxu0 0.0
    %600 = vmatprep.subr.mxu0 0.0
    %601 = vmatpush1.msra.mxu0 0.0
    %602 = vmatprep.subr.mxu0 0.0
    %603 = vmatpush1.msra.mxu0 0.0
    %604 = vmatprep.subr.mxu0 0.0
    %605 = vmatpush1.msra.mxu0 0.0
    %606 = vmatprep.mubr.f32.mxu0 0.0
    %607 = vmatmul.mubr.f32.gmra.mrb[0].mxu0 %v540
    %v608 = vpop.f32.mrb[0].mxu0
    %v609 = vadd.f32 0.0, %v608
    %v610 = vpop.f32.mrb[0].mxu0
    %611 = vdwg.mxu0
    %612 = vrot.lane.b32.xlu0 %v237, 120
    %v613 = vpop.permute.xlu0 %612
    %v614 = vsel %vm278, %v613, 0
    %616 = vmatprep.subr.mxu0 0.0
    %617 = vmatpush1.xpose.msra.mxu0 %v282
    %618 = vmatprep.subr.mxu0 0.0
    %619 = vmatpush1.xpose.msra.mxu0 0.0
    %620 = vmatprep.subr.mxu0 0.0
    %621 = vmatpush1.xpose.msra.mxu0 0.0
    %622 = vmatprep.subr.mxu0 0.0
    %623 = vmatpush1.xpose.msra.mxu0 0.0
    %624 = vmatprep.subr.mxu0 0.0
    %625 = vmatpush1.xpose.msra.mxu0 0.0
    %626 = vmatprep.subr.mxu0 0.0
    %627 = vmatpush1.xpose.msra.mxu0 0.0
    %628 = vmatprep.subr.mxu0 0.0
    %629 = vmatpush1.xpose.msra.mxu0 0.0
    %630 = vmatprep.subr.mxu0 0.0
    %631 = vmatpush1.xpose.msra.mxu0 0.0
    %632 = vmatprep.subr.mxu0 0.0
    %633 = vmatpush1.xpose.msra.mxu0 0.0
    %634 = vmatprep.subr.mxu0 0.0
    %635 = vmatpush1.xpose.msra.mxu0 0.0
    %636 = vmatprep.subr.mxu0 0.0
    %637 = vmatpush1.xpose.msra.mxu0 0.0
    %638 = vmatprep.subr.mxu0 0.0
    %639 = vmatpush1.xpose.msra.mxu0 0.0
    %640 = vmatprep.subr.mxu0 0.0
    %641 = vmatpush1.xpose.msra.mxu0 0.0
    %642 = vmatprep.subr.mxu0 0.0
    %643 = vmatpush1.xpose.msra.mxu0 0.0
    %644 = vmatprep.subr.mxu0 0.0
    %645 = vmatpush1.xpose.msra.mxu0 0.0
    %646 = vmatprep.subr.mxu0 0.0
    %647 = vmatpush1.xpose.msra.mxu0 0.0
    %648 = vmatprep.subr.mxu0 0.0
    %649 = vmatpush1.xpose.msra.mxu0 0.0
    %650 = vmatprep.subr.mxu0 0.0
    %651 = vmatpush1.xpose.msra.mxu0 0.0
    %652 = vmatprep.subr.mxu0 0.0
    %653 = vmatpush1.xpose.msra.mxu0 0.0
    %654 = vmatprep.subr.mxu0 0.0
    %655 = vmatpush1.xpose.msra.mxu0 0.0
    %656 = vmatprep.subr.mxu0 0.0
    %657 = vmatpush1.xpose.msra.mxu0 0.0
    %658 = vmatprep.subr.mxu0 0.0
    %659 = vmatpush1.xpose.msra.mxu0 0.0
    %660 = vmatprep.subr.mxu0 0.0
    %661 = vmatpush1.xpose.msra.mxu0 0.0
    %662 = vmatprep.subr.mxu0 0.0
    %663 = vmatpush1.xpose.msra.mxu0 0.0
    %664 = vmatprep.subr.mxu0 0.0
    %665 = vmatpush1.xpose.msra.mxu0 0.0
    %666 = vmatprep.subr.mxu0 0.0
    %667 = vmatpush1.xpose.msra.mxu0 0.0
    %668 = vmatprep.subr.mxu0 0.0
    %669 = vmatpush1.xpose.msra.mxu0 0.0
    %670 = vmatprep.subr.mxu0 0.0
    %671 = vmatpush1.xpose.msra.mxu0 0.0
    %672 = vmatprep.subr.mxu0 0.0
    %673 = vmatpush1.xpose.msra.mxu0 0.0
    %674 = vmatprep.subr.mxu0 0.0
    %675 = vmatpush1.xpose.msra.mxu0 0.0
    %676 = vmatprep.subr.mxu0 0.0
    %677 = vmatpush1.xpose.msra.mxu0 0.0
    %678 = vmatprep.subr.mxu0 0.0
    %679 = vmatpush1.xpose.msra.mxu0 0.0
    %680 = vmatprep.mubr.f32.mxu0 0.0
    %681 = vmatmul.mubr.f32.gmra.mrb[0].mxu0 %v614
    %v682 = vpop.f32.mrb[0].mxu0
    %v683 = vadd.f32 0.0, %v682
    %v684 = vpop.f32.mrb[0].mxu0
    %685 = vdwg.mxu0
    %686 = vrot.lane.b32.xlu0 %v238, 120
    %v687 = vpop.permute.xlu0 %686
    %v688 = vsel %vm278, %v687, 0
    %690 = vmatprep.subr.mxu0 0.0
    %691 = vmatpush1.xpose.msra.mxu0 %v360
    %692 = vmatprep.subr.mxu0 0.0
    %693 = vmatpush1.xpose.msra.mxu0 0.0
    %694 = vmatprep.subr.mxu0 0.0
    %695 = vmatpush1.xpose.msra.mxu0 0.0
    %696 = vmatprep.subr.mxu0 0.0
    %697 = vmatpush1.xpose.msra.mxu0 0.0
    %698 = vmatprep.subr.mxu0 0.0
    %699 = vmatpush1.xpose.msra.mxu0 0.0
    %700 = vmatprep.subr.mxu0 0.0
    %701 = vmatpush1.xpose.msra.mxu0 0.0
    %702 = vmatprep.subr.mxu0 0.0
    %703 = vmatpush1.xpose.msra.mxu0 0.0
    %704 = vmatprep.subr.mxu0 0.0
    %705 = vmatpush1.xpose.msra.mxu0 0.0
    %706 = vmatprep.subr.mxu0 0.0
    %707 = vmatpush1.xpose.msra.mxu0 0.0
    %708 = vmatprep.subr.mxu0 0.0
    %709 = vmatpush1.xpose.msra.mxu0 0.0
    %710 = vmatprep.subr.mxu0 0.0
    %711 = vmatpush1.xpose.msra.mxu0 0.0
    %712 = vmatprep.subr.mxu0 0.0
    %713 = vmatpush1.xpose.msra.mxu0 0.0
    %714 = vmatprep.subr.mxu0 0.0
    %715 = vmatpush1.xpose.msra.mxu0 0.0
    %716 = vmatprep.subr.mxu0 0.0
    %717 = vmatpush1.xpose.msra.mxu0 0.0
    %718 = vmatprep.subr.mxu0 0.0
    %719 = vmatpush1.xpose.msra.mxu0 0.0
    %720 = vmatprep.subr.mxu0 0.0
    %721 = vmatpush1.xpose.msra.mxu0 0.0
    %722 = vmatprep.subr.mxu0 0.0
    %723 = vmatpush1.xpose.msra.mxu0 0.0
    %724 = vmatprep.subr.mxu0 0.0
    %725 = vmatpush1.xpose.msra.mxu0 0.0
    %726 = vmatprep.subr.mxu0 0.0
    %727 = vmatpush1.xpose.msra.mxu0 0.0
    %728 = vmatprep.subr.mxu0 0.0
    %729 = vmatpush1.xpose.msra.mxu0 0.0
    %730 = vmatprep.subr.mxu0 0.0
    %731 = vmatpush1.xpose.msra.mxu0 0.0
    %732 = vmatprep.subr.mxu0 0.0
    %733 = vmatpush1.xpose.msra.mxu0 0.0
    %734 = vmatprep.subr.mxu0 0.0
    %735 = vmatpush1.xpose.msra.mxu0 0.0
    %736 = vmatprep.subr.mxu0 0.0
    %737 = vmatpush1.xpose.msra.mxu0 0.0
    %738 = vmatprep.subr.mxu0 0.0
    %739 = vmatpush1.xpose.msra.mxu0 0.0
    %740 = vmatprep.subr.mxu0 0.0
    %741 = vmatpush1.xpose.msra.mxu0 0.0
    %742 = vmatprep.subr.mxu0 0.0
    %743 = vmatpush1.xpose.msra.mxu0 0.0
    %744 = vmatprep.subr.mxu0 0.0
    %745 = vmatpush1.xpose.msra.mxu0 0.0
    %746 = vmatprep.subr.mxu0 0.0
    %747 = vmatpush1.xpose.msra.mxu0 0.0
    %748 = vmatprep.subr.mxu0 0.0
    %749 = vmatpush1.xpose.msra.mxu0 0.0
    %750 = vmatprep.subr.mxu0 0.0
    %751 = vmatpush1.xpose.msra.mxu0 0.0
    %752 = vmatprep.subr.mxu0 0.0
    %753 = vmatpush1.xpose.msra.mxu0 0.0
    %754 = vmatprep.mubr.f32.mxu0 0.0
    %755 = vmatmul.mubr.f32.gmra.mrb[0].mxu0 %v688
    %v756 = vpop.f32.mrb[0].mxu0
    %v757 = vadd.f32 0.0, %v756
    %v758 = vpop.f32.mrb[0].mxu0
    %759 = vdwg.mxu0
    %v760 = vmul.f32 %v683, 0.35355338
    %v761 = vmul.f32 %v757, 0.35355338
    %v762 = vadd.f32 %v760, %v273
    %v763 = vadd.f32 %v761, %v274
    %v764 = vsel %vm278, %v762, -inf
    %765 = vmax.xlane.f32.xlu0 %v764
    %v766 = vpop.xlane.xlu0 %765
    %v767 = vsel %vm278, %v763, -inf
    %768 = vmax.xlane.f32.xlu0 %v767
    %v769 = vpop.xlane.xlu0 %768
    %v770 = vsub.f32 %v762, %v766
    %v771 = vsub.f32 %v763, %v769
    %v772 = vmul.f32 %v770, 1.442695
    %v773 = vpow.pop %v772
    %v774 = vmul.f32 %v771, 1.442695
    %v775 = vpow.pop %v774
    %v776 = vsel %vm278, %v773, 0.0
    %777 = vadd.xlane.f32.xlu0 %v776
    %v778 = vpop.xlane.xlu0 %777
    %v779 = vsel %vm278, %v775, 0.0
    %780 = vadd.xlane.f32.xlu0 %v779
    %v781 = vpop.xlane.xlu0 %780
    %v782 = vrcp.pop %v778
    %v783 = vrcp.pop %v781
    %v784 = vmul.f32 %v773, %v782
    %v785 = vmul.f32 %v775, %v783
    %v787 = vsel %vm278, %v784, 0
    %789 = vmatprep.subr.mxu0 0.0
    %790 = vmatpush1.msra.mxu0 %v460
    %791 = vmatprep.subr.mxu0 0.0
    %792 = vmatpush1.msra.mxu0 0.0
    %793 = vmatprep.subr.mxu0 0.0
    %794 = vmatpush1.msra.mxu0 0.0
    %795 = vmatprep.subr.mxu0 0.0
    %796 = vmatpush1.msra.mxu0 0.0
    %797 = vmatprep.subr.mxu0 0.0
    %798 = vmatpush1.msra.mxu0 0.0
    %799 = vmatprep.subr.mxu0 0.0
    %800 = vmatpush1.msra.mxu0 0.0
    %801 = vmatprep.subr.mxu0 0.0
    %802 = vmatpush1.msra.mxu0 0.0
    %803 = vmatprep.subr.mxu0 0.0
    %804 = vmatpush1.msra.mxu0 0.0
    %805 = vmatprep.subr.mxu0 0.0
    %806 = vmatpush1.msra.mxu0 0.0
    %807 = vmatprep.subr.mxu0 0.0
    %808 = vmatpush1.msra.mxu0 0.0
    %809 = vmatprep.subr.mxu0 0.0
    %810 = vmatpush1.msra.mxu0 0.0
    %811 = vmatprep.subr.mxu0 0.0
    %812 = vmatpush1.msra.mxu0 0.0
    %813 = vmatprep.subr.mxu0 0.0
    %814 = vmatpush1.msra.mxu0 0.0
    %815 = vmatprep.subr.mxu0 0.0
    %816 = vmatpush1.msra.mxu0 0.0
    %817 = vmatprep.subr.mxu0 0.0
    %818 = vmatpush1.msra.mxu0 0.0
    %819 = vmatprep.subr.mxu0 0.0
    %820 = vmatpush1.msra.mxu0 0.0
    %821 = vmatprep.subr.mxu0 0.0
    %822 = vmatpush1.msra.mxu0 0.0
    %823 = vmatprep.subr.mxu0 0.0
    %824 = vmatpush1.msra.mxu0 0.0
    %825 = vmatprep.subr.mxu0 0.0
    %826 = vmatpush1.msra.mxu0 0.0
    %827 = vmatprep.subr.mxu0 0.0
    %828 = vmatpush1.msra.mxu0 0.0
    %829 = vmatprep.subr.mxu0 0.0
    %830 = vmatpush1.msra.mxu0 0.0
    %831 = vmatprep.subr.mxu0 0.0
    %832 = vmatpush1.msra.mxu0 0.0
    %833 = vmatprep.subr.mxu0 0.0
    %834 = vmatpush1.msra.mxu0 0.0
    %835 = vmatprep.subr.mxu0 0.0
    %836 = vmatpush1.msra.mxu0 0.0
    %837 = vmatprep.subr.mxu0 0.0
    %838 = vmatpush1.msra.mxu0 0.0
    %839 = vmatprep.subr.mxu0 0.0
    %840 = vmatpush1.msra.mxu0 0.0
    %841 = vmatprep.subr.mxu0 0.0
    %842 = vmatpush1.msra.mxu0 0.0
    %843 = vmatprep.subr.mxu0 0.0
    %844 = vmatpush1.msra.mxu0 0.0
    %845 = vmatprep.subr.mxu0 0.0
    %846 = vmatpush1.msra.mxu0 0.0
    %847 = vmatprep.subr.mxu0 0.0
    %848 = vmatpush1.msra.mxu0 0.0
    %849 = vmatprep.subr.mxu0 0.0
    %850 = vmatpush1.msra.mxu0 0.0
    %851 = vmatprep.subr.mxu0 0.0
    %852 = vmatpush1.msra.mxu0 0.0
    %853 = vmatprep.mubr.f32.mxu0 0.0
    %854 = vmatmul.mubr.f32.gmra.mrb[0].mxu0 %v787
    %v855 = vpop.f32.mrb[0].mxu0
    %v856 = vadd.f32 0.0, %v855
    %v857 = vpop.f32.mrb[0].mxu0
    %858 = vdwg.mxu0
    %v860 = vsel %vm278, %v785, 0
    %862 = vmatprep.subr.mxu0 0.0
    %863 = vmatpush1.msra.mxu0 %v537
    %864 = vmatprep.subr.mxu0 0.0
    %865 = vmatpush1.msra.mxu0 0.0
    %866 = vmatprep.subr.mxu0 0.0
    %867 = vmatpush1.msra.mxu0 0.0
    %868 = vmatprep.subr.mxu0 0.0
    %869 = vmatpush1.msra.mxu0 0.0
    %870 = vmatprep.subr.mxu0 0.0
    %871 = vmatpush1.msra.mxu0 0.0
    %872 = vmatprep.subr.mxu0 0.0
    %873 = vmatpush1.msra.mxu0 0.0
    %874 = vmatprep.subr.mxu0 0.0
    %875 = vmatpush1.msra.mxu0 0.0
    %876 = vmatprep.subr.mxu0 0.0
    %877 = vmatpush1.msra.mxu0 0.0
    %878 = vmatprep.subr.mxu0 0.0
    %879 = vmatpush1.msra.mxu0 0.0
    %880 = vmatprep.subr.mxu0 0.0
    %881 = vmatpush1.msra.mxu0 0.0
    %882 = vmatprep.subr.mxu0 0.0
    %883 = vmatpush1.msra.mxu0 0.0
    %884 = vmatprep.subr.mxu0 0.0
    %885 = vmatpush1.msra.mxu0 0.0
    %886 = vmatprep.subr.mxu0 0.0
    %887 = vmatpush1.msra.mxu0 0.0
    %888 = vmatprep.subr.mxu0 0.0
    %889 = vmatpush1.msra.mxu0 0.0
    %890 = vmatprep.subr.mxu0 0.0
    %891 = vmatpush1.msra.mxu0 0.0
    %892 = vmatprep.subr.mxu0 0.0
    %893 = vmatpush1.msra.mxu0 0.0
    %894 = vmatprep.subr.mxu0 0.0
    %895 = vmatpush1.msra.mxu0 0.0
    %896 = vmatprep.subr.mxu0 0.0
    %897 = vmatpush1.msra.mxu0 0.0
    %898 = vmatprep.subr.mxu0 0.0
    %899 = vmatpush1.msra.mxu0 0.0
    %900 = vmatprep.subr.mxu0 0.0
    %901 = vmatpush1.msra.mxu0 0.0
    %902 = vmatprep.subr.mxu0 0.0
    %903 = vmatpush1.msra.mxu0 0.0
    %904 = vmatprep.subr.mxu0 0.0
    %905 = vmatpush1.msra.mxu0 0.0
    %906 = vmatprep.subr.mxu0 0.0
    %907 = vmatpush1.msra.mxu0 0.0
    %908 = vmatprep.subr.mxu0 0.0
    %909 = vmatpush1.msra.mxu0 0.0
    %910 = vmatprep.subr.mxu0 0.0
    %911 = vmatpush1.msra.mxu0 0.0
    %912 = vmatprep.subr.mxu0 0.0
    %913 = vmatpush1.msra.mxu0 0.0
    %914 = vmatprep.subr.mxu0 0.0
    %915 = vmatpush1.msra.mxu0 0.0
    %916 = vmatprep.subr.mxu0 0.0
    %917 = vmatpush1.msra.mxu0 0.0
    %918 = vmatprep.subr.mxu0 0.0
    %919 = vmatpush1.msra.mxu0 0.0
    %920 = vmatprep.subr.mxu0 0.0
    %921 = vmatpush1.msra.mxu0 0.0
    %922 = vmatprep.subr.mxu0 0.0
    %923 = vmatpush1.msra.mxu0 0.0
    %924 = vmatprep.subr.mxu0 0.0
    %925 = vmatpush1.msra.mxu0 0.0
    %926 = vmatprep.mubr.f32.mxu0 0.0
    %927 = vmatmul.mubr.f32.gmra.mrb[0].mxu0 %v860
    %v928 = vpop.f32.mrb[0].mxu0
    %v929 = vadd.f32 0.0, %v928
    %v930 = vpop.f32.mrb[0].mxu0
    %931 = vdwg.mxu0
    %932 = vrot.lane.b32.xlu0 %v237, 112
    %v933 = vpop.permute.xlu0 %932
    %934 = vrot.lane.b32.xlu0 %v271, 56
    %v935 = vpop.permute.xlu0 %934
    %v936 = vsel %vm278, %v933, 0
    %v938 = vsel %vm278, %v935, 0
    %940 = vmatprep.subr.mxu0 0.0
    %941 = vmatpush1.xpose.msra.mxu0 %v938
    %942 = vmatprep.subr.mxu0 0.0
    %943 = vmatpush1.xpose.msra.mxu0 0.0
    %944 = vmatprep.subr.mxu0 0.0
    %945 = vmatpush1.xpose.msra.mxu0 0.0
    %946 = vmatprep.subr.mxu0 0.0
    %947 = vmatpush1.xpose.msra.mxu0 0.0
    %948 = vmatprep.subr.mxu0 0.0
    %949 = vmatpush1.xpose.msra.mxu0 0.0
    %950 = vmatprep.subr.mxu0 0.0
    %951 = vmatpush1.xpose.msra.mxu0 0.0
    %952 = vmatprep.subr.mxu0 0.0
    %953 = vmatpush1.xpose.msra.mxu0 0.0
    %954 = vmatprep.subr.mxu0 0.0
    %955 = vmatpush1.xpose.msra.mxu0 0.0
    %956 = vmatprep.subr.mxu0 0.0
    %957 = vmatpush1.xpose.msra.mxu0 0.0
    %958 = vmatprep.subr.mxu0 0.0
    %959 = vmatpush1.xpose.msra.mxu0 0.0
    %960 = vmatprep.subr.mxu0 0.0
    %961 = vmatpush1.xpose.msra.mxu0 0.0
    %962 = vmatprep.subr.mxu0 0.0
    %963 = vmatpush1.xpose.msra.mxu0 0.0
    %964 = vmatprep.subr.mxu0 0.0
    %965 = vmatpush1.xpose.msra.mxu0 0.0
    %966 = vmatprep.subr.mxu0 0.0
    %967 = vmatpush1.xpose.msra.mxu0 0.0
    %968 = vmatprep.subr.mxu0 0.0
    %969 = vmatpush1.xpose.msra.mxu0 0.0
    %970 = vmatprep.subr.mxu0 0.0
    %971 = vmatpush1.xpose.msra.mxu0 0.0
    %972 = vmatprep.subr.mxu0 0.0
    %973 = vmatpush1.xpose.msra.mxu0 0.0
    %974 = vmatprep.subr.mxu0 0.0
    %975 = vmatpush1.xpose.msra.mxu0 0.0
    %976 = vmatprep.subr.mxu0 0.0
    %977 = vmatpush1.xpose.msra.mxu0 0.0
    %978 = vmatprep.subr.mxu0 0.0
    %979 = vmatpush1.xpose.msra.mxu0 0.0
    %980 = vmatprep.subr.mxu0 0.0
    %981 = vmatpush1.xpose.msra.mxu0 0.0
    %982 = vmatprep.subr.mxu0 0.0
    %983 = vmatpush1.xpose.msra.mxu0 0.0
    %984 = vmatprep.subr.mxu0 0.0
    %985 = vmatpush1.xpose.msra.mxu0 0.0
    %986 = vmatprep.subr.mxu0 0.0
    %987 = vmatpush1.xpose.msra.mxu0 0.0
    %988 = vmatprep.subr.mxu0 0.0
    %989 = vmatpush1.xpose.msra.mxu0 0.0
    %990 = vmatprep.subr.mxu0 0.0
    %991 = vmatpush1.xpose.msra.mxu0 0.0
    %992 = vmatprep.subr.mxu0 0.0
    %993 = vmatpush1.xpose.msra.mxu0 0.0
    %994 = vmatprep.subr.mxu0 0.0
    %995 = vmatpush1.xpose.msra.mxu0 0.0
    %996 = vmatprep.subr.mxu0 0.0
    %997 = vmatpush1.xpose.msra.mxu0 0.0
    %998 = vmatprep.subr.mxu0 0.0
    %999 = vmatpush1.xpose.msra.mxu0 0.0
    %1000 = vmatprep.subr.mxu0 0.0
    %1001 = vmatpush1.xpose.msra.mxu0 0.0
    %1002 = vmatprep.subr.mxu0 0.0
    %1003 = vmatpush1.xpose.msra.mxu0 0.0
    %1004 = vmatprep.mubr.f32.mxu0 0.0
    %1005 = vmatmul.mubr.f32.gmra.mrb[0].mxu0 %v936
    %v1006 = vpop.f32.mrb[0].mxu0
    %v1007 = vadd.f32 0.0, %v1006
    %v1008 = vpop.f32.mrb[0].mxu0
    %1009 = vdwg.mxu0
    %1010 = vrot.lane.b32.xlu0 %v238, 112
    %v1011 = vpop.permute.xlu0 %1010
    %1012 = vrot.lane.b32.xlu0 %v272, 56
    %v1013 = vpop.permute.xlu0 %1012
    %v1014 = vsel %vm278, %v1011, 0
    %v1016 = vsel %vm278, %v1013, 0
    %1018 = vmatprep.subr.mxu0 0.0
    %1019 = vmatpush1.xpose.msra.mxu0 %v1016
    %1020 = vmatprep.subr.mxu0 0.0
    %1021 = vmatpush1.xpose.msra.mxu0 0.0
    %1022 = vmatprep.subr.mxu0 0.0
    %1023 = vmatpush1.xpose.msra.mxu0 0.0
    %1024 = vmatprep.subr.mxu0 0.0
    %1025 = vmatpush1.xpose.msra.mxu0 0.0
    %1026 = vmatprep.subr.mxu0 0.0
    %1027 = vmatpush1.xpose.msra.mxu0 0.0
    %1028 = vmatprep.subr.mxu0 0.0
    %1029 = vmatpush1.xpose.msra.mxu0 0.0
    %1030 = vmatprep.subr.mxu0 0.0
    %1031 = vmatpush1.xpose.msra.mxu0 0.0
    %1032 = vmatprep.subr.mxu0 0.0
    %1033 = vmatpush1.xpose.msra.mxu0 0.0
    %1034 = vmatprep.subr.mxu0 0.0
    %1035 = vmatpush1.xpose.msra.mxu0 0.0
    %1036 = vmatprep.subr.mxu0 0.0
    %1037 = vmatpush1.xpose.msra.mxu0 0.0
    %1038 = vmatprep.subr.mxu0 0.0
    %1039 = vmatpush1.xpose.msra.mxu0 0.0
    %1040 = vmatprep.subr.mxu0 0.0
    %1041 = vmatpush1.xpose.msra.mxu0 0.0
    %1042 = vmatprep.subr.mxu0 0.0
    %1043 = vmatpush1.xpose.msra.mxu0 0.0
    %1044 = vmatprep.subr.mxu0 0.0
    %1045 = vmatpush1.xpose.msra.mxu0 0.0
    %1046 = vmatprep.subr.mxu0 0.0
    %1047 = vmatpush1.xpose.msra.mxu0 0.0
    %1048 = vmatprep.subr.mxu0 0.0
    %1049 = vmatpush1.xpose.msra.mxu0 0.0
    %1050 = vmatprep.subr.mxu0 0.0
    %1051 = vmatpush1.xpose.msra.mxu0 0.0
    %1052 = vmatprep.subr.mxu0 0.0
    %1053 = vmatpush1.xpose.msra.mxu0 0.0
    %1054 = vmatprep.subr.mxu0 0.0
    %1055 = vmatpush1.xpose.msra.mxu0 0.0
    %1056 = vmatprep.subr.mxu0 0.0
    %1057 = vmatpush1.xpose.msra.mxu0 0.0
    %1058 = vmatprep.subr.mxu0 0.0
    %1059 = vmatpush1.xpose.msra.mxu0 0.0
    %1060 = vmatprep.subr.mxu0 0.0
    %1061 = vmatpush1.xpose.msra.mxu0 0.0
    %1062 = vmatprep.subr.mxu0 0.0
    %1063 = vmatpush1.xpose.msra.mxu0 0.0
    %1064 = vmatprep.subr.mxu0 0.0
    %1065 = vmatpush1.xpose.msra.mxu0 0.0
    %1066 = vmatprep.subr.mxu0 0.0
    %1067 = vmatpush1.xpose.msra.mxu0 0.0
    %1068 = vmatprep.subr.mxu0 0.0
    %1069 = vmatpush1.xpose.msra.mxu0 0.0
    %1070 = vmatprep.subr.mxu0 0.0
    %1071 = vmatpush1.xpose.msra.mxu0 0.0
    %1072 = vmatprep.subr.mxu0 0.0
    %1073 = vmatpush1.xpose.msra.mxu0 0.0
    %1074 = vmatprep.subr.mxu0 0.0
    %1075 = vmatpush1.xpose.msra.mxu0 0.0
    %1076 = vmatprep.subr.mxu0 0.0
    %1077 = vmatpush1.xpose.msra.mxu0 0.0
    %1078 = vmatprep.subr.mxu0 0.0
    %1079 = vmatpush1.xpose.msra.mxu0 0.0
    %1080 = vmatprep.subr.mxu0 0.0
    %1081 = vmatpush1.xpose.msra.mxu0 0.0
    %1082 = vmatprep.mubr.f32.mxu0 0.0
    %1083 = vmatmul.mubr.f32.gmra.mrb[0].mxu0 %v1014
    %v1084 = vpop.f32.mrb[0].mxu0
    %v1085 = vadd.f32 0.0, %v1084
    %v1086 = vpop.f32.mrb[0].mxu0
    %1087 = vdwg.mxu0
    %v1088 = vmul.f32 %v1007, 0.35355338
    %v1089 = vmul.f32 %v1085, 0.35355338
    %v1090 = vadd.f32 %v1088, %v273
    %v1091 = vadd.f32 %v1089, %v274
    %v1092 = vsel %vm278, %v1090, -inf
    %1093 = vmax.xlane.f32.xlu0 %v1092
    %v1094 = vpop.xlane.xlu0 %1093
    %v1095 = vsel %vm278, %v1091, -inf
    %1096 = vmax.xlane.f32.xlu0 %v1095
    %v1097 = vpop.xlane.xlu0 %1096
    %v1098 = vsub.f32 %v1090, %v1094
    %v1099 = vsub.f32 %v1091, %v1097
    %v1100 = vmul.f32 %v1098, 1.442695
    %v1101 = vpow.pop %v1100
    %v1102 = vmul.f32 %v1099, 1.442695
    %v1103 = vpow.pop %v1102
    %v1104 = vsel %vm278, %v1101, 0.0
    %1105 = vadd.xlane.f32.xlu0 %v1104
    %v1106 = vpop.xlane.xlu0 %1105
    %v1107 = vsel %vm278, %v1103, 0.0
    %1108 = vadd.xlane.f32.xlu0 %v1107
    %v1109 = vpop.xlane.xlu0 %1108
    %v1110 = vrcp.pop %v1106
    %v1111 = vrcp.pop %v1109
    %v1112 = vmul.f32 %v1101, %v1110
    %v1113 = vmul.f32 %v1103, %v1111
    %1114 = vrot.lane.b32.xlu0 %v205, 24
    %v1115 = vpop.permute.xlu0 %1114
    %v1118 = vsel %vm278, %v1112, 0
    %1120 = vmatprep.subr.mxu0 0.0
    %1121 = vmatpush1.msra.mxu0 %v1115
    %1122 = vmatprep.subr.mxu0 0.0
    %1123 = vmatpush1.msra.mxu0 0.0
    %1124 = vmatprep.subr.mxu0 0.0
    %1125 = vmatpush1.msra.mxu0 0.0
    %1126 = vmatprep.subr.mxu0 0.0
    %1127 = vmatpush1.msra.mxu0 0.0
    %1128 = vmatprep.subr.mxu0 0.0
    %1129 = vmatpush1.msra.mxu0 0.0
    %1130 = vmatprep.subr.mxu0 0.0
    %1131 = vmatpush1.msra.mxu0 0.0
    %1132 = vmatprep.subr.mxu0 0.0
    %1133 = vmatpush1.msra.mxu0 0.0
    %1134 = vmatprep.subr.mxu0 0.0
    %1135 = vmatpush1.msra.mxu0 0.0
    %1136 = vmatprep.subr.mxu0 0.0
    %1137 = vmatpush1.msra.mxu0 0.0
    %1138 = vmatprep.subr.mxu0 0.0
    %1139 = vmatpush1.msra.mxu0 0.0
    %1140 = vmatprep.subr.mxu0 0.0
    %1141 = vmatpush1.msra.mxu0 0.0
    %1142 = vmatprep.subr.mxu0 0.0
    %1143 = vmatpush1.msra.mxu0 0.0
    %1144 = vmatprep.subr.mxu0 0.0
    %1145 = vmatpush1.msra.mxu0 0.0
    %1146 = vmatprep.subr.mxu0 0.0
    %1147 = vmatpush1.msra.mxu0 0.0
    %1148 = vmatprep.subr.mxu0 0.0
    %1149 = vmatpush1.msra.mxu0 0.0
    %1150 = vmatprep.subr.mxu0 0.0
    %1151 = vmatpush1.msra.mxu0 0.0
    %1152 = vmatprep.subr.mxu0 0.0
    %1153 = vmatpush1.msra.mxu0 0.0
    %1154 = vmatprep.subr.mxu0 0.0
    %1155 = vmatpush1.msra.mxu0 0.0
    %1156 = vmatprep.subr.mxu0 0.0
    %1157 = vmatpush1.msra.mxu0 0.0
    %1158 = vmatprep.subr.mxu0 0.0
    %1159 = vmatpush1.msra.mxu0 0.0
    %1160 = vmatprep.subr.mxu0 0.0
    %1161 = vmatpush1.msra.mxu0 0.0
    %1162 = vmatprep.subr.mxu0 0.0
    %1163 = vmatpush1.msra.mxu0 0.0
    %1164 = vmatprep.subr.mxu0 0.0
    %1165 = vmatpush1.msra.mxu0 0.0
    %1166 = vmatprep.subr.mxu0 0.0
    %1167 = vmatpush1.msra.mxu0 0.0
    %1168 = vmatprep.subr.mxu0 0.0
    %1169 = vmatpush1.msra.mxu0 0.0
    %1170 = vmatprep.subr.mxu0 0.0
    %1171 = vmatpush1.msra.mxu0 0.0
    %1172 = vmatprep.subr.mxu0 0.0
    %1173 = vmatpush1.msra.mxu0 0.0
    %1174 = vmatprep.subr.mxu0 0.0
    %1175 = vmatpush1.msra.mxu0 0.0
    %1176 = vmatprep.subr.mxu0 0.0
    %1177 = vmatpush1.msra.mxu0 0.0
    %1178 = vmatprep.subr.mxu0 0.0
    %1179 = vmatpush1.msra.mxu0 0.0
    %1180 = vmatprep.subr.mxu0 0.0
    %1181 = vmatpush1.msra.mxu0 0.0
    %1182 = vmatprep.subr.mxu0 0.0
    %1183 = vmatpush1.msra.mxu0 0.0
    %1184 = vmatprep.mubr.f32.mxu0 0.0
    %1185 = vmatmul.mubr.f32.gmra.mrb[0].mxu0 %v1118
    %v1186 = vpop.f32.mrb[0].mxu0
    %v1187 = vadd.f32 0.0, %v1186
    %v1188 = vpop.f32.mrb[0].mxu0
    %1189 = vdwg.mxu0
    %1190 = vrot.lane.b32.xlu0 %v210, 24
    %v1191 = vpop.permute.xlu0 %1190
    %v1194 = vsel %vm278, %v1113, 0
    %1196 = vmatprep.subr.mxu0 0.0
    %1197 = vmatpush1.msra.mxu0 %v1191
    %1198 = vmatprep.subr.mxu0 0.0
    %1199 = vmatpush1.msra.mxu0 0.0
    %1200 = vmatprep.subr.mxu0 0.0
    %1201 = vmatpush1.msra.mxu0 0.0
    %1202 = vmatprep.subr.mxu0 0.0
    %1203 = vmatpush1.msra.mxu0 0.0
    %1204 = vmatprep.subr.mxu0 0.0
    %1205 = vmatpush1.msra.mxu0 0.0
    %1206 = vmatprep.subr.mxu0 0.0
    %1207 = vmatpush1.msra.mxu0 0.0
    %1208 = vmatprep.subr.mxu0 0.0
    %1209 = vmatpush1.msra.mxu0 0.0
    %1210 = vmatprep.subr.mxu0 0.0
    %1211 = vmatpush1.msra.mxu0 0.0
    %1212 = vmatprep.subr.mxu0 0.0
    %1213 = vmatpush1.msra.mxu0 0.0
    %1214 = vmatprep.subr.mxu0 0.0
    %1215 = vmatpush1.msra.mxu0 0.0
    %1216 = vmatprep.subr.mxu0 0.0
    %1217 = vmatpush1.msra.mxu0 0.0
    %1218 = vmatprep.subr.mxu0 0.0
    %1219 = vmatpush1.msra.mxu0 0.0
    %1220 = vmatprep.subr.mxu0 0.0
    %1221 = vmatpush1.msra.mxu0 0.0
    %1222 = vmatprep.subr.mxu0 0.0
    %1223 = vmatpush1.msra.mxu0 0.0
    %1224 = vmatprep.subr.mxu0 0.0
    %1225 = vmatpush1.msra.mxu0 0.0
    %1226 = vmatprep.subr.mxu0 0.0
    %1227 = vmatpush1.msra.mxu0 0.0
    %1228 = vmatprep.subr.mxu0 0.0
    %1229 = vmatpush1.msra.mxu0 0.0
    %1230 = vmatprep.subr.mxu0 0.0
    %1231 = vmatpush1.msra.mxu0 0.0
    %1232 = vmatprep.subr.mxu0 0.0
    %1233 = vmatpush1.msra.mxu0 0.0
    %1234 = vmatprep.subr.mxu0 0.0
    %1235 = vmatpush1.msra.mxu0 0.0
    %1236 = vmatprep.subr.mxu0 0.0
    %1237 = vmatpush1.msra.mxu0 0.0
    %1238 = vmatprep.subr.mxu0 0.0
    %1239 = vmatpush1.msra.mxu0 0.0
    %1240 = vmatprep.subr.mxu0 0.0
    %1241 = vmatpush1.msra.mxu0 0.0
    %1242 = vmatprep.subr.mxu0 0.0
    %1243 = vmatpush1.msra.mxu0 0.0
    %1244 = vmatprep.subr.mxu0 0.0
    %1245 = vmatpush1.msra.mxu0 0.0
    %1246 = vmatprep.subr.mxu0 0.0
    %1247 = vmatpush1.msra.mxu0 0.0
    %1248 = vmatprep.subr.mxu0 0.0
    %1249 = vmatpush1.msra.mxu0 0.0
    %1250 = vmatprep.subr.mxu0 0.0
    %1251 = vmatpush1.msra.mxu0 0.0
    %1252 = vmatprep.subr.mxu0 0.0
    %1253 = vmatpush1.msra.mxu0 0.0
    %1254 = vmatprep.subr.mxu0 0.0
    %1255 = vmatpush1.msra.mxu0 0.0
    %1256 = vmatprep.subr.mxu0 0.0
    %1257 = vmatpush1.msra.mxu0 0.0
    %1258 = vmatprep.subr.mxu0 0.0
    %1259 = vmatpush1.msra.mxu0 0.0
    %1260 = vmatprep.mubr.f32.mxu0 0.0
    %1261 = vmatmul.mubr.f32.gmra.mrb[0].mxu0 %v1194
    %v1262 = vpop.f32.mrb[0].mxu0
    %v1263 = vadd.f32 0.0, %v1262
    %v1264 = vpop.f32.mrb[0].mxu0
    %1265 = vdwg.mxu0
    %1266 = vrot.lane.b32.xlu0 %v237, 104
    %v1267 = vpop.permute.xlu0 %1266
    %v1268 = vsel %vm278, %v1267, 0
    %1270 = vmatprep.subr.mxu0 0.0
    %1271 = vmatpush1.xpose.msra.mxu0 %v938
    %1272 = vmatprep.subr.mxu0 0.0
    %1273 = vmatpush1.xpose.msra.mxu0 0.0
    %1274 = vmatprep.subr.mxu0 0.0
    %1275 = vmatpush1.xpose.msra.mxu0 0.0
    %1276 = vmatprep.subr.mxu0 0.0
    %1277 = vmatpush1.xpose.msra.mxu0 0.0
    %1278 = vmatprep.subr.mxu0 0.0
    %1279 = vmatpush1.xpose.msra.mxu0 0.0
    %1280 = vmatprep.subr.mxu0 0.0
    %1281 = vmatpush1.xpose.msra.mxu0 0.0
    %1282 = vmatprep.subr.mxu0 0.0
    %1283 = vmatpush1.xpose.msra.mxu0 0.0
    %1284 = vmatprep.subr.mxu0 0.0
    %1285 = vmatpush1.xpose.msra.mxu0 0.0
    %1286 = vmatprep.subr.mxu0 0.0
    %1287 = vmatpush1.xpose.msra.mxu0 0.0
    %1288 = vmatprep.subr.mxu0 0.0
    %1289 = vmatpush1.xpose.msra.mxu0 0.0
    %1290 = vmatprep.subr.mxu0 0.0
    %1291 = vmatpush1.xpose.msra.mxu0 0.0
    %1292 = vmatprep.subr.mxu0 0.0
    %1293 = vmatpush1.xpose.msra.mxu0 0.0
    %1294 = vmatprep.subr.mxu0 0.0
    %1295 = vmatpush1.xpose.msra.mxu0 0.0
    %1296 = vmatprep.subr.mxu0 0.0
    %1297 = vmatpush1.xpose.msra.mxu0 0.0
    %1298 = vmatprep.subr.mxu0 0.0
    %1299 = vmatpush1.xpose.msra.mxu0 0.0
    %1300 = vmatprep.subr.mxu0 0.0
    %1301 = vmatpush1.xpose.msra.mxu0 0.0
    %1302 = vmatprep.subr.mxu0 0.0
    %1303 = vmatpush1.xpose.msra.mxu0 0.0
    %1304 = vmatprep.subr.mxu0 0.0
    %1305 = vmatpush1.xpose.msra.mxu0 0.0
    %1306 = vmatprep.subr.mxu0 0.0
    %1307 = vmatpush1.xpose.msra.mxu0 0.0
    %1308 = vmatprep.subr.mxu0 0.0
    %1309 = vmatpush1.xpose.msra.mxu0 0.0
    %1310 = vmatprep.subr.mxu0 0.0
    %1311 = vmatpush1.xpose.msra.mxu0 0.0
    %1312 = vmatprep.subr.mxu0 0.0
    %1313 = vmatpush1.xpose.msra.mxu0 0.0
    %1314 = vmatprep.subr.mxu0 0.0
    %1315 = vmatpush1.xpose.msra.mxu0 0.0
    %1316 = vmatprep.subr.mxu0 0.0
    %1317 = vmatpush1.xpose.msra.mxu0 0.0
    %1318 = vmatprep.subr.mxu0 0.0
    %1319 = vmatpush1.xpose.msra.mxu0 0.0
    %1320 = vmatprep.subr.mxu0 0.0
    %1321 = vmatpush1.xpose.msra.mxu0 0.0
    %1322 = vmatprep.subr.mxu0 0.0
    %1323 = vmatpush1.xpose.msra.mxu0 0.0
    %1324 = vmatprep.subr.mxu0 0.0
    %1325 = vmatpush1.xpose.msra.mxu0 0.0
    %1326 = vmatprep.subr.mxu0 0.0
    %1327 = vmatpush1.xpose.msra.mxu0 0.0
    %1328 = vmatprep.subr.mxu0 0.0
    %1329 = vmatpush1.xpose.msra.mxu0 0.0
    %1330 = vmatprep.subr.mxu0 0.0
    %1331 = vmatpush1.xpose.msra.mxu0 0.0
    %1332 = vmatprep.subr.mxu0 0.0
    %1333 = vmatpush1.xpose.msra.mxu0 0.0
    %1334 = vmatprep.mubr.f32.mxu0 0.0
    %1335 = vmatmul.mubr.f32.gmra.mrb[0].mxu0 %v1268
    %v1336 = vpop.f32.mrb[0].mxu0
    %v1337 = vadd.f32 0.0, %v1336
    %v1338 = vpop.f32.mrb[0].mxu0
    %1339 = vdwg.mxu0
    %1340 = vrot.lane.b32.xlu0 %v238, 104
    %v1341 = vpop.permute.xlu0 %1340
    %v1342 = vsel %vm278, %v1341, 0
    %1344 = vmatprep.subr.mxu0 0.0
    %1345 = vmatpush1.xpose.msra.mxu0 %v1016
    %1346 = vmatprep.subr.mxu0 0.0
    %1347 = vmatpush1.xpose.msra.mxu0 0.0
    %1348 = vmatprep.subr.mxu0 0.0
    %1349 = vmatpush1.xpose.msra.mxu0 0.0
    %1350 = vmatprep.subr.mxu0 0.0
    %1351 = vmatpush1.xpose.msra.mxu0 0.0
    %1352 = vmatprep.subr.mxu0 0.0
    %1353 = vmatpush1.xpose.msra.mxu0 0.0
    %1354 = vmatprep.subr.mxu0 0.0
    %1355 = vmatpush1.xpose.msra.mxu0 0.0
    %1356 = vmatprep.subr.mxu0 0.0
    %1357 = vmatpush1.xpose.msra.mxu0 0.0
    %1358 = vmatprep.subr.mxu0 0.0
    %1359 = vmatpush1.xpose.msra.mxu0 0.0
    %1360 = vmatprep.subr.mxu0 0.0
    %1361 = vmatpush1.xpose.msra.mxu0 0.0
    %1362 = vmatprep.subr.mxu0 0.0
    %1363 = vmatpush1.xpose.msra.mxu0 0.0
    %1364 = vmatprep.subr.mxu0 0.0
    %1365 = vmatpush1.xpose.msra.mxu0 0.0
    %1366 = vmatprep.subr.mxu0 0.0
    %1367 = vmatpush1.xpose.msra.mxu0 0.0
    %1368 = vmatprep.subr.mxu0 0.0
    %1369 = vmatpush1.xpose.msra.mxu0 0.0
    %1370 = vmatprep.subr.mxu0 0.0
    %1371 = vmatpush1.xpose.msra.mxu0 0.0
    %1372 = vmatprep.subr.mxu0 0.0
    %1373 = vmatpush1.xpose.msra.mxu0 0.0
    %1374 = vmatprep.subr.mxu0 0.0
    %1375 = vmatpush1.xpose.msra.mxu0 0.0
    %1376 = vmatprep.subr.mxu0 0.0
    %1377 = vmatpush1.xpose.msra.mxu0 0.0
    %1378 = vmatprep.subr.mxu0 0.0
    %1379 = vmatpush1.xpose.msra.mxu0 0.0
    %1380 = vmatprep.subr.mxu0 0.0
    %1381 = vmatpush1.xpose.msra.mxu0 0.0
    %1382 = vmatprep.subr.mxu0 0.0
    %1383 = vmatpush1.xpose.msra.mxu0 0.0
    %1384 = vmatprep.subr.mxu0 0.0
    %1385 = vmatpush1.xpose.msra.mxu0 0.0
    %1386 = vmatprep.subr.mxu0 0.0
    %1387 = vmatpush1.xpose.msra.mxu0 0.0
    %1388 = vmatprep.subr.mxu0 0.0
    %1389 = vmatpush1.xpose.msra.mxu0 0.0
    %1390 = vmatprep.subr.mxu0 0.0
    %1391 = vmatpush1.xpose.msra.mxu0 0.0
    %1392 = vmatprep.subr.mxu0 0.0
    %1393 = vmatpush1.xpose.msra.mxu0 0.0
    %1394 = vmatprep.subr.mxu0 0.0
    %1395 = vmatpush1.xpose.msra.mxu0 0.0
    %1396 = vmatprep.subr.mxu0 0.0
    %1397 = vmatpush1.xpose.msra.mxu0 0.0
    %1398 = vmatprep.subr.mxu0 0.0
    %1399 = vmatpush1.xpose.msra.mxu0 0.0
    %1400 = vmatprep.subr.mxu0 0.0
    %1401 = vmatpush1.xpose.msra.mxu0 0.0
    %1402 = vmatprep.subr.mxu0 0.0
    %1403 = vmatpush1.xpose.msra.mxu0 0.0
    %1404 = vmatprep.subr.mxu0 0.0
    %1405 = vmatpush1.xpose.msra.mxu0 0.0
    %1406 = vmatprep.subr.mxu0 0.0
    %1407 = vmatpush1.xpose.msra.mxu0 0.0
    %1408 = vmatprep.mubr.f32.mxu0 0.0
    %1409 = vmatmul.mubr.f32.gmra.mrb[0].mxu0 %v1342
    %v1410 = vpop.f32.mrb[0].mxu0
    %v1411 = vadd.f32 0.0, %v1410
    %v1412 = vpop.f32.mrb[0].mxu0
    %1413 = vdwg.mxu0
    %v1414 = vmul.f32 %v1337, 0.35355338
    %v1415 = vmul.f32 %v1411, 0.35355338
    %v1416 = vadd.f32 %v1414, %v273
    %v1417 = vadd.f32 %v1415, %v274
    %v1418 = vsel %vm278, %v1416, -inf
    %1419 = vmax.xlane.f32.xlu0 %v1418
    %v1420 = vpop.xlane.xlu0 %1419
    %v1421 = vsel %vm278, %v1417, -inf
    %1422 = vmax.xlane.f32.xlu0 %v1421
    %v1423 = vpop.xlane.xlu0 %1422
    %v1424 = vsub.f32 %v1416, %v1420
    %v1425 = vsub.f32 %v1417, %v1423
    %v1426 = vmul.f32 %v1424, 1.442695
    %v1427 = vpow.pop %v1426
    %v1428 = vmul.f32 %v1425, 1.442695
    %v1429 = vpow.pop %v1428
    %v1430 = vsel %vm278, %v1427, 0.0
    %1431 = vadd.xlane.f32.xlu0 %v1430
    %v1432 = vpop.xlane.xlu0 %1431
    %v1433 = vsel %vm278, %v1429, 0.0
    %1434 = vadd.xlane.f32.xlu0 %v1433
    %v1435 = vpop.xlane.xlu0 %1434
    %v1436 = vrcp.pop %v1432
    %v1437 = vrcp.pop %v1435
    %v1438 = vmul.f32 %v1427, %v1436
    %v1439 = vmul.f32 %v1429, %v1437
    %v1441 = vsel %vm278, %v1438, 0
    %1443 = vmatprep.subr.mxu0 0.0
    %1444 = vmatpush1.msra.mxu0 %v1115
    %1445 = vmatprep.subr.mxu0 0.0
    %1446 = vmatpush1.msra.mxu0 0.0
    %1447 = vmatprep.subr.mxu0 0.0
    %1448 = vmatpush1.msra.mxu0 0.0
    %1449 = vmatprep.subr.mxu0 0.0
    %1450 = vmatpush1.msra.mxu0 0.0
    %1451 = vmatprep.subr.mxu0 0.0
    %1452 = vmatpush1.msra.mxu0 0.0
    %1453 = vmatprep.subr.mxu0 0.0
    %1454 = vmatpush1.msra.mxu0 0.0
    %1455 = vmatprep.subr.mxu0 0.0
    %1456 = vmatpush1.msra.mxu0 0.0
    %1457 = vmatprep.subr.mxu0 0.0
    %1458 = vmatpush1.msra.mxu0 0.0
    %1459 = vmatprep.subr.mxu0 0.0
    %1460 = vmatpush1.msra.mxu0 0.0
    %1461 = vmatprep.subr.mxu0 0.0
    %1462 = vmatpush1.msra.mxu0 0.0
    %1463 = vmatprep.subr.mxu0 0.0
    %1464 = vmatpush1.msra.mxu0 0.0
    %1465 = vmatprep.subr.mxu0 0.0
    %1466 = vmatpush1.msra.mxu0 0.0
    %1467 = vmatprep.subr.mxu0 0.0
    %1468 = vmatpush1.msra.mxu0 0.0
    %1469 = vmatprep.subr.mxu0 0.0
    %1470 = vmatpush1.msra.mxu0 0.0
    %1471 = vmatprep.subr.mxu0 0.0
    %1472 = vmatpush1.msra.mxu0 0.0
    %1473 = vmatprep.subr.mxu0 0.0
    %1474 = vmatpush1.msra.mxu0 0.0
    %1475 = vmatprep.subr.mxu0 0.0
    %1476 = vmatpush1.msra.mxu0 0.0
    %1477 = vmatprep.subr.mxu0 0.0
    %1478 = vmatpush1.msra.mxu0 0.0
    %1479 = vmatprep.subr.mxu0 0.0
    %1480 = vmatpush1.msra.mxu0 0.0
    %1481 = vmatprep.subr.mxu0 0.0
    %1482 = vmatpush1.msra.mxu0 0.0
    %1483 = vmatprep.subr.mxu0 0.0
    %1484 = vmatpush1.msra.mxu0 0.0
    %1485 = vmatprep.subr.mxu0 0.0
    %1486 = vmatpush1.msra.mxu0 0.0
    %1487 = vmatprep.subr.mxu0 0.0
    %1488 = vmatpush1.msra.mxu0 0.0
    %1489 = vmatprep.subr.mxu0 0.0
    %1490 = vmatpush1.msra.mxu0 0.0
    %1491 = vmatprep.subr.mxu0 0.0
    %1492 = vmatpush1.msra.mxu0 0.0
    %1493 = vmatprep.subr.mxu0 0.0
    %1494 = vmatpush1.msra.mxu0 0.0
    %1495 = vmatprep.subr.mxu0 0.0
    %1496 = vmatpush1.msra.mxu0 0.0
    %1497 = vmatprep.subr.mxu0 0.0
    %1498 = vmatpush1.msra.mxu0 0.0
    %1499 = vmatprep.subr.mxu0 0.0
    %1500 = vmatpush1.msra.mxu0 0.0
    %1501 = vmatprep.subr.mxu0 0.0
    %1502 = vmatpush1.msra.mxu0 0.0
    %1503 = vmatprep.subr.mxu0 0.0
    %1504 = vmatpush1.msra.mxu0 0.0
    %1505 = vmatprep.subr.mxu0 0.0
    %1506 = vmatpush1.msra.mxu0 0.0
    %1507 = vmatprep.mubr.f32.mxu0 0.0
    %1508 = vmatmul.mubr.f32.gmra.mrb[0].mxu0 %v1441
    %v1509 = vpop.f32.mrb[0].mxu0
    %v1510 = vadd.f32 0.0, %v1509
    %v1511 = vpop.f32.mrb[0].mxu0
    %1512 = vdwg.mxu0
    %v1514 = vsel %vm278, %v1439, 0
    %1516 = vmatprep.subr.mxu0 0.0
    %1517 = vmatpush1.msra.mxu0 %v1191
    %1518 = vmatprep.subr.mxu0 0.0
    %1519 = vmatpush1.msra.mxu0 0.0
    %1520 = vmatprep.subr.mxu0 0.0
    %1521 = vmatpush1.msra.mxu0 0.0
    %1522 = vmatprep.subr.mxu0 0.0
    %1523 = vmatpush1.msra.mxu0 0.0
    %1524 = vmatprep.subr.mxu0 0.0
    %1525 = vmatpush1.msra.mxu0 0.0
    %1526 = vmatprep.subr.mxu0 0.0
    %1527 = vmatpush1.msra.mxu0 0.0
    %1528 = vmatprep.subr.mxu0 0.0
    %1529 = vmatpush1.msra.mxu0 0.0
    %1530 = vmatprep.subr.mxu0 0.0
    %1531 = vmatpush1.msra.mxu0 0.0
    %1532 = vmatprep.subr.mxu0 0.0
    %1533 = vmatpush1.msra.mxu0 0.0
    %1534 = vmatprep.subr.mxu0 0.0
    %1535 = vmatpush1.msra.mxu0 0.0
    %1536 = vmatprep.subr.mxu0 0.0
    %1537 = vmatpush1.msra.mxu0 0.0
    %1538 = vmatprep.subr.mxu0 0.0
    %1539 = vmatpush1.msra.mxu0 0.0
    %1540 = vmatprep.subr.mxu0 0.0
    %1541 = vmatpush1.msra.mxu0 0.0
    %1542 = vmatprep.subr.mxu0 0.0
    %1543 = vmatpush1.msra.mxu0 0.0
    %1544 = vmatprep.subr.mxu0 0.0
    %1545 = vmatpush1.msra.mxu0 0.0
    %1546 = vmatprep.subr.mxu0 0.0
    %1547 = vmatpush1.msra.mxu0 0.0
    %1548 = vmatprep.subr.mxu0 0.0
    %1549 = vmatpush1.msra.mxu0 0.0
    %1550 = vmatprep.subr.mxu0 0.0
    %1551 = vmatpush1.msra.mxu0 0.0
    %1552 = vmatprep.subr.mxu0 0.0
    %1553 = vmatpush1.msra.mxu0 0.0
    %1554 = vmatprep.subr.mxu0 0.0
    %1555 = vmatpush1.msra.mxu0 0.0
    %1556 = vmatprep.subr.mxu0 0.0
    %1557 = vmatpush1.msra.mxu0 0.0
    %1558 = vmatprep.subr.mxu0 0.0
    %1559 = vmatpush1.msra.mxu0 0.0
    %1560 = vmatprep.subr.mxu0 0.0
    %1561 = vmatpush1.msra.mxu0 0.0
    %1562 = vmatprep.subr.mxu0 0.0
    %1563 = vmatpush1.msra.mxu0 0.0
    %1564 = vmatprep.subr.mxu0 0.0
    %1565 = vmatpush1.msra.mxu0 0.0
    %1566 = vmatprep.subr.mxu0 0.0
    %1567 = vmatpush1.msra.mxu0 0.0
    %1568 = vmatprep.subr.mxu0 0.0
    %1569 = vmatpush1.msra.mxu0 0.0
    %1570 = vmatprep.subr.mxu0 0.0
    %1571 = vmatpush1.msra.mxu0 0.0
    %1572 = vmatprep.subr.mxu0 0.0
    %1573 = vmatpush1.msra.mxu0 0.0
    %1574 = vmatprep.subr.mxu0 0.0
    %1575 = vmatpush1.msra.mxu0 0.0
    %1576 = vmatprep.subr.mxu0 0.0
    %1577 = vmatpush1.msra.mxu0 0.0
    %1578 = vmatprep.subr.mxu0 0.0
    %1579 = vmatpush1.msra.mxu0 0.0
    %1580 = vmatprep.mubr.f32.mxu0 0.0
    %1581 = vmatmul.mubr.f32.gmra.mrb[0].mxu0 %v1514
    %v1582 = vpop.f32.mrb[0].mxu0
    %v1583 = vadd.f32 0.0, %v1582
    %v1584 = vpop.f32.mrb[0].mxu0
    %1585 = vdwg.mxu0
    %1588 = vrot.lane.b32.xlu0 %v856, 8
    %v1589 = vpop.permute.xlu0 %1588
    %1590 = vrot.lane.b32.xlu0 %v929, 8
    %v1591 = vpop.permute.xlu0 %1590
    %1596 = vrot.lane.b32.xlu0 %v1187, 16
    %v1597 = vpop.permute.xlu0 %1596
    %1598 = vrot.lane.b32.xlu0 %v1263, 16
    %v1599 = vpop.permute.xlu0 %1598
    %1604 = vrot.lane.b32.xlu0 %v1510, 24
    %v1605 = vpop.permute.xlu0 %1604
    %1606 = vrot.lane.b32.xlu0 %v1583, 24
    %v1607 = vpop.permute.xlu0 %1606
    %v1610 = vsel %vm278, %v532, %v1589
    %v1611 = vsel %vm278, %v609, %v1591
    %vm1612 = vcmask 130048
    %v1613 = vsel %vm1612, %v1610, %v1597
    %v1614 = vsel %vm1612, %v1611, %v1599
    %vm1615 = vcmask 195584
    %v1616 = vsel %vm1615, %v1613, %v1605
    %v1617 = vsel %vm1615, %v1614, %v1607
    %v1618 = vld [vmem:[#allocation7] sm:$0xff]
    %v1619 = vld [vmem:[#allocation7 + $0x8] sm:$0xff]
    %v1620 = vld [vmem:[#allocation7 + $0x10] sm:$0xff]
    %v1621 = vld [vmem:[#allocation7 + $0x18] sm:$0xff]
    %v1623 = vsel %vm131, %v1616, 0
    %v1626 = vsel %vm131, %v1617, 0
    %1628 = vmatprep.subr.mxu0 0.0
    %1629 = vmatpush1.msra.mxu0 %v1618
    %1630 = vmatprep.subr.mxu0 0.0
    %1631 = vmatpush1.msra.mxu0 %v1619
    %1632 = vmatprep.subr.mxu0 0.0
    %1633 = vmatpush1.msra.mxu0 %v1620
    %1634 = vmatprep.subr.mxu0 0.0
    %1635 = vmatpush1.msra.mxu0 %v1621
    %1636 = vmatprep.subr.mxu0 0.0
    %1637 = vmatpush1.msra.mxu0 0.0
    %1638 = vmatprep.subr.mxu0 0.0
    %1639 = vmatpush1.msra.mxu0 0.0
    %1640 = vmatprep.subr.mxu0 0.0
    %1641 = vmatpush1.msra.mxu0 0.0
    %1642 = vmatprep.subr.mxu0 0.0
    %1643 = vmatpush1.msra.mxu0 0.0
    %1644 = vmatprep.subr.mxu0 0.0
    %1645 = vmatpush1.msra.mxu0 0.0
    %1646 = vmatprep.subr.mxu0 0.0
    %1647 = vmatpush1.msra.mxu0 0.0
    %1648 = vmatprep.subr.mxu0 0.0
    %1649 = vmatpush1.msra.mxu0 0.0
    %1650 = vmatprep.subr.mxu0 0.0
    %1651 = vmatpush1.msra.mxu0 0.0
    %1652 = vmatprep.subr.mxu0 0.0
    %1653 = vmatpush1.msra.mxu0 0.0
    %1654 = vmatprep.subr.mxu0 0.0
    %1655 = vmatpush1.msra.mxu0 0.0
    %1656 = vmatprep.subr.mxu0 0.0
    %1657 = vmatpush1.msra.mxu0 0.0
    %1658 = vmatprep.subr.mxu0 0.0
    %1659 = vmatpush1.msra.mxu0 0.0
    %1660 = vmatprep.subr.mxu0 0.0
    %1661 = vmatpush1.msra.mxu0 0.0
    %1662 = vmatprep.subr.mxu0 0.0
    %1663 = vmatpush1.msra.mxu0 0.0
    %1664 = vmatprep.subr.mxu0 0.0
    %1665 = vmatpush1.msra.mxu0 0.0
    %1666 = vmatprep.subr.mxu0 0.0
    %1667 = vmatpush1.msra.mxu0 0.0
    %1668 = vmatprep.subr.mxu0 0.0
    %1669 = vmatpush1.msra.mxu0 0.0
    %1670 = vmatprep.subr.mxu0 0.0
    %1671 = vmatpush1.msra.mxu0 0.0
    %1672 = vmatprep.subr.mxu0 0.0
    %1673 = vmatpush1.msra.mxu0 0.0
    %1674 = vmatprep.subr.mxu0 0.0
    %1675 = vmatpush1.msra.mxu0 0.0
    %1676 = vmatprep.subr.mxu0 0.0
    %1677 = vmatpush1.msra.mxu0 0.0
    %1678 = vmatprep.subr.mxu0 0.0
    %1679 = vmatpush1.msra.mxu0 0.0
    %1680 = vmatprep.subr.mxu0 0.0
    %1681 = vmatpush1.msra.mxu0 0.0
    %1682 = vmatprep.subr.mxu0 0.0
    %1683 = vmatpush1.msra.mxu0 0.0
    %1684 = vmatprep.subr.mxu0 0.0
    %1685 = vmatpush1.msra.mxu0 0.0
    %1686 = vmatprep.subr.mxu0 0.0
    %1687 = vmatpush1.msra.mxu0 0.0
    %1688 = vmatprep.subr.mxu0 0.0
    %1689 = vmatpush1.msra.mxu0 0.0
    %1690 = vmatprep.subr.mxu0 0.0
    %1691 = vmatpush1.msra.mxu0 0.0
    %1692 = vmatprep.mubr.f32.mxu0 0.0
    %1693 = vmatmul.mubr.f32.gmra.mrb[0].mxu0 %v1623
    %v1694 = vpop.f32.mrb[0].mxu0
    %v1695 = vadd.f32 0.0, %v1694
    %v1696 = vpop.f32.mrb[0].mxu0
    %1697 = vmatprep.mubr.f32.mxu0 0.0
    %1698 = vmatmul.mubr.f32.gmra.mrb[0].mxu0 %v1626
    %v1699 = vpop.f32.mrb[0].mxu0
    %v1700 = vadd.f32 0.0, %v1699
    %v1701 = vpop.f32.mrb[0].mxu0
    %1702 = vdwg.mxu0
    %1703 = vst.msk [vmem:[#allocation14] sm:$0xff] %vm131, %v1695
    %1704 = vst.msk [vmem:[#allocation14 + $0x8] sm:$0xff] %vm131, %v1700
    // Predicated region
    $region62: #{tpu_custom_call.1} parent=1 // pred_check
      _
    $region63: #{tpu_custom_call.1} parent=1 // pred_check_branch
      %1706 = sbr.rel (0) target = $region65
    $region64: #{tpu_custom_call.1} parent=1 // pred_region
      %s1708 = ssub.s32 256, 256
      %1709 = vsyncadd [#allocation4], %s1708
      %s1710 = sshll.u32 [#allocation14], 4
      %s1711 = int_to_ptr.vmem [resolvable:$true] %s1710
      %1716 = dma.vmem_to_hbm [thread:$0]  %s1711, 256, %s8, [#allocation4], 128, 128, 8
    $region65: #{tpu_custom_call.1} parent=1 // pred_fallthru
      _
    // Predicated region
    $region66: #{tpu_custom_call.1} parent=1 // pred_check
      _
    $region67: #{tpu_custom_call.1} parent=1 // pred_check_branch
      %1718 = sbr.rel (0) target = $region69
    $region68: #{tpu_custom_call.1} parent=1 // pred_region
      %1719 = dma.done [#allocation4], 256
    $region69: #{tpu_custom_call.1} parent=1 // pred_fallthru
      _
    %1720 = vsyncpa [#allocation3], 1
    %1721 = vsyncpa [#allocation6], 1
    %1722 = vsyncpa [#allocation9], 1
    %1723 = vsyncpa [#allocation12], 1
    %1724 = vsyncpa [#allocation4], 1

</llo_original>
